<compile_context>
chip_gen: v7x
topology: tpu7x:2x2x1
jax: 0.10.0
libtpu: 0.0.40
codegen_flags: <defaults>
</compile_context>

<pallas_src>
import functools

import jax
import jax.numpy as jnp
from jax import lax
from jax.experimental import pallas as pl
from jax.experimental.pallas import tpu as pltpu


def _dot(a, b):
    return jnp.dot(a, b, preferred_element_type=jnp.float32)


def lv_attention_kernel(lab_ref, visual_ref, w_ref, wf1_ref, vec_ref, out_ref,
                        *, D, C1, eps):
    bf16 = jnp.bfloat16
    N = visual_ref.shape[0]
    d_ffn = wf1_ref.shape[1]

    # Static row offsets inside the packed slabs (all multiples of 16 -> bf16
    # sublane-tile aligned slices, no layout copies).
    O_WPK, O_WQ, O_WK, O_WV, O_W12, O_W3, O_WF2 = (
        0, 2 * D, 3 * D, 4 * D, 5 * D, 7 * D, 9 * D)
    R_BPK, R_B12, R_B3, R_BF2, R_GAMMA, R_BETA, R_DUMMY, R_EMB = 0, 1, 2, 3, 4, 5, 6, 8

    # ---- forward_language_model: in-kernel one-hot x pre-projected table (exact f32) ----
    lab = lab_ref[...]                                            # (N, 1) int32
    cls_ids = lax.broadcasted_iota(jnp.int32, (N, C1), 1)
    good = (cls_ids == lab).astype(jnp.float32)                   # (N, C1) one-hot
    emb = vec_ref[R_EMB:R_EMB + C1, :]                            # (C1, D) f32
    text_f32 = _dot(good, emb)                                    # (N, D) f32, pre-ReLU
    text_bf = text_f32.astype(bf16)

    visual = visual_ref[...]                                      # (N, D) bf16

    # ---- proj_k(cat([visual, text], -1)) as one 128-lane-K matmul ----
    vt = jnp.concatenate([visual, text_bf], axis=-1)              # (N, 2D) bf16
    value = _dot(vt, w_ref[O_WPK:O_WQ, :]) + vec_ref[R_BPK:R_BPK + 1, :]   # (N, D) f32

    text_r = jnp.maximum(text_f32, 0.0).astype(bf16)              # f32 ReLU, then cast
    value_r = jnp.maximum(value, 0.0).astype(bf16)

    # ---- SingleHeadSiameseAttention (dummy bg key handled analytically) ----
    # w_q slab row-block already carries the 1/sqrt(D) temperature.
    q = _dot(visual, w_ref[O_WQ:O_WK, :])                         # (N, D) f32 (pre-scaled)
    k = _dot(text_r, w_ref[O_WK:O_WV, :])                         # (N, D) f32
    v = _dot(value_r, w_ref[O_WV:O_W12, :])                       # (N, D) f32

    scores_k = lax.dot_general(
        q.astype(bf16), k.astype(bf16), (((1,), (1,)), ((), ())),
        preferred_element_type=jnp.float32)                       # (N, N) f32
    dummy = vec_ref[R_DUMMY:R_DUMMY + 1, :]                       # (1, D) f32
    scores_d = jnp.sum(q * dummy, axis=-1, keepdims=True)         # (N, 1) f32

    # softmax over N real keys + 1 dummy key (dummy value row is zero);
    # normalization deferred past the value matmul.
    m = jnp.maximum(jnp.max(scores_k, axis=-1, keepdims=True), scores_d)
    e_k = jnp.exp(scores_k - m)
    e_d = jnp.exp(scores_d - m)
    denom = jnp.sum(e_k, axis=-1, keepdims=True) + e_d
    out = _dot(e_k.astype(bf16), v.astype(bf16)) * pl.reciprocal(denom, approx=True)

    # ---- linear1/linear2 as one block-diagonal matmul, linear3 as one stacked matmul ----
    res_f32 = visual.astype(jnp.float32)
    ab = jnp.concatenate([out * res_f32, res_f32 - out], axis=-1).astype(bf16)  # (N, 2D)
    o12 = jnp.maximum(_dot(ab, w_ref[O_W12:O_W3, :]) + vec_ref[R_B12:R_B12 + 1, :], 0.0)
    cat3 = jnp.concatenate([o12.astype(bf16), visual], axis=-1)                 # (N, 2D)
    o3 = _dot(cat3, w_ref[O_W3:O_WF2, :]) + vec_ref[R_B3:R_B3 + 1, :]           # (N, D)

    # ---- FFN + LayerNorm(norm3) ----
    wf1 = wf1_ref[0:D, :]
    bf1 = wf1_ref[D:D + 1, :].astype(jnp.float32)
    h = jnp.maximum(_dot(o3.astype(bf16), wf1) + bf1, 0.0)                      # (N, d_ffn)
    t = o3 + _dot(h.astype(bf16), w_ref[O_WF2:O_WF2 + d_ffn, :]) \
        + vec_ref[R_BF2:R_BF2 + 1, :]                                           # (N, D)

    # single-pass LayerNorm statistics: var = E[t^2] - mean^2
    mean = jnp.mean(t, axis=-1, keepdims=True)
    meansq = jnp.mean(t * t, axis=-1, keepdims=True)
    var = meansq - mean * mean
    y = (t - mean) * lax.rsqrt(var + eps) * vec_ref[R_GAMMA:R_GAMMA + 1, :] \
        + vec_ref[R_BETA:R_BETA + 1, :]
    sim = jnp.maximum(y, 0.0)                                     # final ReLU of LV_attention

    # lane-dense (N, 2D=128) output slab [text_feat | sim]: one unmasked store path
    out_ref[...] = jnp.concatenate([text_f32, sim], axis=-1)


def prepare_kernel_params(params):
    """Parameter-only preprocessing + slab packing: done once, outside the per-call path."""
    bf16 = jnp.bfloat16
    D = params["wq"].shape[0]
    half = D // 2
    temperature = float(D) ** 0.5

    # proj2 applied to the (classes + bg) embedding table depends only on parameters.
    emb_proj = params["embed_cat"] @ params["w_proj2"] + params["b_proj2"]   # (C+1, D)
    C1 = emb_proj.shape[0]

    zeros = jnp.zeros((D, half), jnp.float32)
    w12 = jnp.concatenate(
        [jnp.concatenate([params["w1"], zeros], axis=1),
         jnp.concatenate([zeros, params["w2"]], axis=1)], axis=0)            # (2D, D) block-diag
    w3 = jnp.concatenate([params["w3a"], params["w3b"], params["w3c"]], axis=0)   # (2D, D)
    w_pk = jnp.concatenate([params["w_pk_v"], params["w_pk_t"]], axis=0)     # (2D, D)
    wq_scaled = params["wq"] / temperature                        # fold attention temperature

    # bf16 lane-64 weight slab: rows [w_pk | wq/temp | wk | wv | w12 | w3 | wf2]
    w_slab = jnp.concatenate(
        [w_pk, wq_scaled, params["wk"], params["wv"], w12, w3, params["wf2"]],
        axis=0).astype(bf16)                                      # (9D + d_ffn, D)

    # bf16 lane-1024 slab: [wf1 | bf1]
    wf1_slab = jnp.concatenate([params["wf1"], params["bf1"]], axis=0).astype(bf16)  # (D+1, d_ffn)

    # f32 vector slab: biases / affine / dummy key / padding / projected embedding table
    b12 = jnp.concatenate([params["b1"], params["b2"]], axis=-1)             # (1, D)
    vec_slab = jnp.concatenate(
        [params["b_pk"], b12, params["b3"], params["bf2"],
         params["gamma"], params["beta"], params["dummy"],
         jnp.zeros((1, D), jnp.float32), emb_proj], axis=0)                   # (8 + C1, D)

    return dict(w_slab=w_slab, wf1_slab=wf1_slab, vec_slab=vec_slab,
                num_classes_p1=int(C1))


def lv_attention_forward(visual_feat, labels, kparams):
    """Returns (text_feat (N, D), sim2stext (1, N, D)) mirroring the torch output dict."""
    N, D = visual_feat.shape
    C1 = int(kparams["num_classes_p1"])
    d_ffn = kparams["wf1_slab"].shape[1]

    visual_bf = visual_feat.astype(jnp.bfloat16)
    labels_col = labels.astype(jnp.int32).reshape(N, 1)

    kernel = functools.partial(lv_attention_kernel, D=D, C1=C1, eps=1e-5)
    args = (labels_col, visual_bf,
            kparams["w_slab"], kparams["wf1_slab"], kparams["vec_slab"])

    flops = 2 * N * (C1 * D + 9 * D * D + 2 * N * D + 2 * D * d_ffn)
    bytes_accessed = (labels_col.size * 4 + visual_bf.size * 2
                      + kparams["w_slab"].size * 2 + kparams["wf1_slab"].size * 2
                      + kparams["vec_slab"].size * 4 + N * 2 * D * 4)
    cost = pl.CostEstimate(flops=flops, transcendentals=N * (N + 3),
                           bytes_accessed=bytes_accessed)

    vmem = lambda: pl.BlockSpec(memory_space=pltpu.MemorySpace.VMEM)
    slab = pl.pallas_call(
        kernel,
        out_shape=jax.ShapeDtypeStruct((N, 2 * D), jnp.float32),
        in_specs=[vmem() for _ in args],
        out_specs=vmem(),
        cost_estimate=cost,
    )(*args)
    text_feat = slab[:, :D]
    sim = slab[:, D:]
    return text_feat, sim[None]                                   # (1, N, D) like torch


def init_params(key, input_size=64, text_dim=300, num_classes=15, d_ffn=1024,
                init_scale=0.02):
    """Deterministic synthetic parameters; shapes follow the torch __init__."""
    D = input_size
    keys = iter(jax.random.split(key, 32))

    def nrm(shape, std=init_scale):
        return std * jax.random.normal(next(keys), shape, dtype=jnp.float32)

    # TODO(synk): GloVe 6B-300d embeddings + detectron2 class metadata are external
    # data; the (num_classes+1, 300) table (classes + learned w_bg row) is synthetic.
    return dict(
        embed_cat=nrm((num_classes + 1, text_dim), 1.0),
        w_proj2=nrm((text_dim, D)), b_proj2=nrm((1, D)),
        # proj_k weight (2D -> D) split over visual / text halves of the concat input
        w_pk_v=nrm((D, D)), w_pk_t=nrm((D, D)), b_pk=nrm((1, D)),
        wq=nrm((D, D)), wk=nrm((D, D)), wv=nrm((D, D)),
        dummy=nrm((1, D), 1.0),
        w1=nrm((D, D // 2)), b1=jnp.zeros((1, D // 2), jnp.float32),
        w2=nrm((D, D // 2)), b2=jnp.zeros((1, D // 2), jnp.float32),
        # linear3 weight (2D -> D) split over [output1 | output2 | residual]
        w3a=nrm((D // 2, D)), w3b=nrm((D // 2, D)), w3c=nrm((D, D)),
        b3=jnp.zeros((1, D), jnp.float32),
        wf1=nrm((D, d_ffn)), bf1=jnp.zeros((1, d_ffn), jnp.float32),
        wf2=nrm((d_ffn, D)), bf2=jnp.zeros((1, D), jnp.float32),
        gamma=jnp.ones((1, D), jnp.float32), beta=jnp.zeros((1, D), jnp.float32),
    )


def reference_forward(visual_feat, labels, params, eps=1e-5):
    """Pure-JAX f32 reference mirroring the torch forward (concat formulation)."""
    N, D = visual_feat.shape
    C1 = params["embed_cat"].shape[0]
    good = jax.nn.one_hot(labels, C1, dtype=jnp.float32)
    emb = params["embed_cat"] @ params["w_proj2"] + params["b_proj2"]
    text_feat = good @ emb
    w_pk = jnp.concatenate([params["w_pk_v"], params["w_pk_t"]], axis=0)
    value = jnp.concatenate([visual_feat, text_feat], axis=-1) @ w_pk + params["b_pk"]
    text_r = jax.nn.relu(text_feat)
    value_r = jax.nn.relu(value)
    residual = visual_feat
    q = visual_feat @ params["wq"]
    k = text_r @ params["wk"]
    v = value_r @ params["wv"]
    k = jnp.concatenate([k, params["dummy"]], axis=0)
    v = jnp.concatenate([v, jnp.zeros((1, D), jnp.float32)], axis=0)
    attn = jax.nn.softmax((q @ k.T) / (D ** 0.5), axis=-1)
    out = attn @ v
    o1 = jax.nn.relu((out * residual) @ params["w1"] + params["b1"])
    o2 = jax.nn.relu((residual - out) @ params["w2"] + params["b2"])
    w3 = jnp.concatenate([params["w3a"], params["w3b"], params["w3c"]], axis=0)
    o3 = jnp.concatenate([o1, o2, residual], axis=-1) @ w3 + params["b3"]
    h = jax.nn.relu(o3 @ params["wf1"] + params["bf1"])
    t = o3 + h @ params["wf2"] + params["bf2"]
    mean = t.mean(-1, keepdims=True)
    var = ((t - mean) ** 2).mean(-1, keepdims=True)
    y = (t - mean) / jnp.sqrt(var + eps) * params["gamma"] + params["beta"]
    return text_feat, jax.nn.relu(y)[None]


if __name__ == "__main__":
    key = jax.random.PRNGKey(0)
    kp, kv, kl = jax.random.split(key, 3)

    N, D, num_classes = 16, 64, 15          # boxes, input_size, #classes (bg row added)
    params = init_params(kp, input_size=D, num_classes=num_classes)
    visual = jax.random.normal(kv, (N, D), dtype=jnp.float32)
    labels = jax.random.randint(kl, (N,), 0, num_classes + 1)

    kernel_params = prepare_kernel_params(params)    # parameter-only prep + slab packing (once)
    text_feat, sim2stext = lv_attention_forward(visual, labels, kernel_params)
    jax.block_until_ready((text_feat, sim2stext))

    ref_text, ref_sim = reference_forward(visual, labels, params)
    # text_feat stays in f32 end-to-end -> tight tolerance; sim path uses bf16
    # weights/activations with f32 accumulation -> relaxed tolerance.
    assert jnp.allclose(text_feat, ref_text, atol=1e-4, rtol=1e-4)
    assert jnp.allclose(sim2stext, ref_sim, atol=5e-2, rtol=5e-2)
    print("KERNEL_OK")
</pallas_src>

<mosaic_0001>
module attributes {stable_mosaic.version = 11 : i64} {
  func.func @lv_attention_kernel(%arg0: memref<16x1xi32, #tpu.memory_space<vmem>>, %arg1: memref<16x64xbf16, #tpu.memory_space<vmem>>, %arg2: memref<1600x64xbf16, #tpu.memory_space<vmem>>, %arg3: memref<65x1024xbf16, #tpu.memory_space<vmem>>, %arg4: memref<24x64xf32, #tpu.memory_space<vmem>>, %arg5: memref<16x128xf32, #tpu.memory_space<vmem>>) attributes {dimension_semantics = [], scalar_prefetch = 0 : i64, scratch_operands = 0 : i64, tpu.core_type = #tpu.core_type<tc>} {
    %c0 = arith.constant 0 : index
    %c0_0 = arith.constant 0 : index
    %0 = vector.load %arg0[%c0, %c0_0] : memref<16x1xi32, #tpu.memory_space<vmem>>, vector<16x1xi32>
    %1 = tpu.iota {dimensions = array<i32: 1>} : vector<16x16xi32>
    %2 = vector.broadcast %0 : vector<16x1xi32> to vector<16x16xi32>
    %3 = arith.cmpi eq, %1, %2 : vector<16x16xi32>
    %4 = arith.extui %3 : vector<16x16xi1> to vector<16x16xi32>
    %5 = arith.sitofp %4 : vector<16x16xi32> to vector<16x16xf32>
    %c8 = arith.constant 8 : index
    %c0_1 = arith.constant 0 : index
    %6 = vector.load %arg4[%c8, %c0_1] : memref<24x64xf32, #tpu.memory_space<vmem>>, vector<16x64xf32>
    %cst = arith.constant dense<0.000000e+00> : vector<16x64xf32>
    %7 = tpu.matmul %5, %6, %cst {dimension_numbers = #tpu.dot_dimension_numbers<[1], [0], [0], [1], [0, 0, 1, 1], [], []>} : vector<16x16xf32>, vector<16x64xf32>, vector<16x64xf32> -> vector<16x64xf32>
    %8 = arith.truncf %7 : vector<16x64xf32> to vector<16x64xbf16>
    %c0_2 = arith.constant 0 : index
    %c0_3 = arith.constant 0 : index
    %9 = vector.load %arg1[%c0_2, %c0_3] : memref<16x64xbf16, #tpu.memory_space<vmem>>, vector<16x64xbf16>
    %10 = tpu.concatenate %9, %8 in 1 : vector<16x64xbf16>, vector<16x64xbf16> -> vector<16x128xbf16>
    %c0_4 = arith.constant 0 : index
    %c0_5 = arith.constant 0 : index
    %11 = vector.load %arg2[%c0_4, %c0_5] : memref<1600x64xbf16, #tpu.memory_space<vmem>>, vector<128x64xbf16>
    %cst_6 = arith.constant dense<0.000000e+00> : vector<16x64xf32>
    %12 = tpu.matmul %10, %11, %cst_6 {dimension_numbers = #tpu.dot_dimension_numbers<[1], [0], [0], [1], [0, 0, 1, 1], [], []>} : vector<16x128xbf16>, vector<128x64xbf16>, vector<16x64xf32> -> vector<16x64xf32>
    %c0_7 = arith.constant 0 : index
    %c0_8 = arith.constant 0 : index
    %13 = vector.load %arg4[%c0_7, %c0_8] : memref<24x64xf32, #tpu.memory_space<vmem>>, vector<1x64xf32>
    %14 = vector.broadcast %13 : vector<1x64xf32> to vector<16x64xf32>
    %15 = arith.addf %12, %14 : vector<16x64xf32>
    %cst_9 = arith.constant 0.000000e+00 : f32
    %16 = vector.broadcast %cst_9 : f32 to vector<16x64xf32>
    %17 = arith.maximumf %7, %16 : vector<16x64xf32>
    %18 = arith.truncf %17 : vector<16x64xf32> to vector<16x64xbf16>
    %cst_10 = arith.constant 0.000000e+00 : f32
    %19 = vector.broadcast %cst_10 : f32 to vector<16x64xf32>
    %20 = arith.maximumf %15, %19 : vector<16x64xf32>
    %21 = arith.truncf %20 : vector<16x64xf32> to vector<16x64xbf16>
    %c128 = arith.constant 128 : index
    %c0_11 = arith.constant 0 : index
    %22 = vector.load %arg2[%c128, %c0_11] : memref<1600x64xbf16, #tpu.memory_space<vmem>>, vector<64x64xbf16>
    %cst_12 = arith.constant dense<0.000000e+00> : vector<16x64xf32>
    %23 = tpu.matmul %9, %22, %cst_12 {dimension_numbers = #tpu.dot_dimension_numbers<[1], [0], [0], [1], [0, 0, 1, 1], [], []>} : vector<16x64xbf16>, vector<64x64xbf16>, vector<16x64xf32> -> vector<16x64xf32>
    %c192 = arith.constant 192 : index
    %c0_13 = arith.constant 0 : index
    %24 = vector.load %arg2[%c192, %c0_13] : memref<1600x64xbf16, #tpu.memory_space<vmem>>, vector<64x64xbf16>
    %cst_14 = arith.constant dense<0.000000e+00> : vector<16x64xf32>
    %25 = tpu.matmul %18, %24, %cst_14 {dimension_numbers = #tpu.dot_dimension_numbers<[1], [0], [0], [1], [0, 0, 1, 1], [], []>} : vector<16x64xbf16>, vector<64x64xbf16>, vector<16x64xf32> -> vector<16x64xf32>
    %c256 = arith.constant 256 : index
    %c0_15 = arith.constant 0 : index
    %26 = vector.load %arg2[%c256, %c0_15] : memref<1600x64xbf16, #tpu.memory_space<vmem>>, vector<64x64xbf16>
    %cst_16 = arith.constant dense<0.000000e+00> : vector<16x64xf32>
    %27 = tpu.matmul %21, %26, %cst_16 {dimension_numbers = #tpu.dot_dimension_numbers<[1], [0], [0], [1], [0, 0, 1, 1], [], []>} : vector<16x64xbf16>, vector<64x64xbf16>, vector<16x64xf32> -> vector<16x64xf32>
    %28 = arith.truncf %23 : vector<16x64xf32> to vector<16x64xbf16>
    %29 = arith.truncf %25 : vector<16x64xf32> to vector<16x64xbf16>
    %cst_17 = arith.constant dense<0.000000e+00> : vector<16x16xf32>
    %30 = tpu.matmul %28, %29, %cst_17 {dimension_numbers = #tpu.dot_dimension_numbers<[1], [1], [0], [0], [0, 0, 1, 0], [], []>} : vector<16x64xbf16>, vector<16x64xbf16>, vector<16x16xf32> -> vector<16x16xf32>
    %c6 = arith.constant 6 : index
    %c0_18 = arith.constant 0 : index
    %31 = vector.load %arg4[%c6, %c0_18] : memref<24x64xf32, #tpu.memory_space<vmem>>, vector<1x64xf32>
    %32 = vector.broadcast %31 : vector<1x64xf32> to vector<16x64xf32>
    %33 = arith.mulf %23, %32 : vector<16x64xf32>
    %cst_19 = arith.constant dense<0.000000e+00> : vector<16xf32>
    %34 = vector.multi_reduction <add>, %33, %cst_19 [1] : vector<16x64xf32> to vector<16xf32>
    %35 = vector.shape_cast %34 : vector<16xf32> to vector<16x1xf32>
    %cst_20 = arith.constant dense<0xFF800000> : vector<16xf32>
    %36 = vector.multi_reduction <maximumf>, %30, %cst_20 [1] : vector<16x16xf32> to vector<16xf32>
    %37 = vector.shape_cast %36 : vector<16xf32> to vector<16x1xf32>
    %38 = arith.maximumf %37, %35 : vector<16x1xf32>
    %39 = vector.broadcast %38 : vector<16x1xf32> to vector<16x16xf32>
    %40 = arith.subf %30, %39 : vector<16x16xf32>
    %41 = math.exp %40 : vector<16x16xf32>
    %42 = arith.subf %35, %38 : vector<16x1xf32>
    %43 = math.exp %42 : vector<16x1xf32>
    %cst_21 = arith.constant dense<0.000000e+00> : vector<16xf32>
    %44 = vector.multi_reduction <add>, %41, %cst_21 [1] : vector<16x16xf32> to vector<16xf32>
    %45 = vector.shape_cast %44 : vector<16xf32> to vector<16x1xf32>
    %46 = arith.addf %45, %43 : vector<16x1xf32>
    %47 = arith.truncf %41 : vector<16x16xf32> to vector<16x16xbf16>
    %48 = arith.truncf %27 : vector<16x64xf32> to vector<16x64xbf16>
    %cst_22 = arith.constant dense<0.000000e+00> : vector<16x64xf32>
    %49 = tpu.matmul %47, %48, %cst_22 {dimension_numbers = #tpu.dot_dimension_numbers<[1], [0], [0], [1], [0, 0, 1, 1], [], []>} : vector<16x16xbf16>, vector<16x64xbf16>, vector<16x64xf32> -> vector<16x64xf32>
    %50 = tpu.reciprocal %46 {approx = true} : vector<16x1xf32> -> vector<16x1xf32>
    %51 = vector.broadcast %50 : vector<16x1xf32> to vector<16x64xf32>
    %52 = arith.mulf %49, %51 : vector<16x64xf32>
    %53 = arith.extf %9 : vector<16x64xbf16> to vector<16x64xf32>
    %54 = arith.mulf %52, %53 : vector<16x64xf32>
    %55 = arith.subf %53, %52 : vector<16x64xf32>
    %56 = tpu.concatenate %54, %55 in 1 : vector<16x64xf32>, vector<16x64xf32> -> vector<16x128xf32>
    %57 = arith.truncf %56 : vector<16x128xf32> to vector<16x128xbf16>
    %c320 = arith.constant 320 : index
    %c0_23 = arith.constant 0 : index
    %58 = vector.load %arg2[%c320, %c0_23] : memref<1600x64xbf16, #tpu.memory_space<vmem>>, vector<128x64xbf16>
    %cst_24 = arith.constant dense<0.000000e+00> : vector<16x64xf32>
    %59 = tpu.matmul %57, %58, %cst_24 {dimension_numbers = #tpu.dot_dimension_numbers<[1], [0], [0], [1], [0, 0, 1, 1], [], []>} : vector<16x128xbf16>, vector<128x64xbf16>, vector<16x64xf32> -> vector<16x64xf32>
    %c1 = arith.constant 1 : index
    %c0_25 = arith.constant 0 : index
    %60 = vector.load %arg4[%c1, %c0_25] : memref<24x64xf32, #tpu.memory_space<vmem>>, vector<1x64xf32>
    %61 = vector.broadcast %60 : vector<1x64xf32> to vector<16x64xf32>
    %62 = arith.addf %59, %61 : vector<16x64xf32>
    %cst_26 = arith.constant 0.000000e+00 : f32
    %63 = vector.broadcast %cst_26 : f32 to vector<16x64xf32>
    %64 = arith.maximumf %62, %63 : vector<16x64xf32>
    %65 = arith.truncf %64 : vector<16x64xf32> to vector<16x64xbf16>
    %66 = tpu.concatenate %65, %9 in 1 : vector<16x64xbf16>, vector<16x64xbf16> -> vector<16x128xbf16>
    %c448 = arith.constant 448 : index
    %c0_27 = arith.constant 0 : index
    %67 = vector.load %arg2[%c448, %c0_27] : memref<1600x64xbf16, #tpu.memory_space<vmem>>, vector<128x64xbf16>
    %cst_28 = arith.constant dense<0.000000e+00> : vector<16x64xf32>
    %68 = tpu.matmul %66, %67, %cst_28 {dimension_numbers = #tpu.dot_dimension_numbers<[1], [0], [0], [1], [0, 0, 1, 1], [], []>} : vector<16x128xbf16>, vector<128x64xbf16>, vector<16x64xf32> -> vector<16x64xf32>
    %c2 = arith.constant 2 : index
    %c0_29 = arith.constant 0 : index
    %69 = vector.load %arg4[%c2, %c0_29] : memref<24x64xf32, #tpu.memory_space<vmem>>, vector<1x64xf32>
    %70 = vector.broadcast %69 : vector<1x64xf32> to vector<16x64xf32>
    %71 = arith.addf %68, %70 : vector<16x64xf32>
    %c0_30 = arith.constant 0 : index
    %c0_31 = arith.constant 0 : index
    %72 = vector.load %arg3[%c0_30, %c0_31] : memref<65x1024xbf16, #tpu.memory_space<vmem>>, vector<64x1024xbf16>
    %c64 = arith.constant 64 : index
    %c0_32 = arith.constant 0 : index
    %73 = vector.load %arg3[%c64, %c0_32] : memref<65x1024xbf16, #tpu.memory_space<vmem>>, vector<1x1024xbf16>
    %74 = arith.extf %73 : vector<1x1024xbf16> to vector<1x1024xf32>
    %75 = arith.truncf %71 : vector<16x64xf32> to vector<16x64xbf16>
    %cst_33 = arith.constant dense<0.000000e+00> : vector<16x1024xf32>
    %76 = tpu.matmul %75, %72, %cst_33 {dimension_numbers = #tpu.dot_dimension_numbers<[1], [0], [0], [1], [0, 0, 1, 1], [], []>} : vector<16x64xbf16>, vector<64x1024xbf16>, vector<16x1024xf32> -> vector<16x1024xf32>
    %77 = vector.broadcast %74 : vector<1x1024xf32> to vector<16x1024xf32>
    %78 = arith.addf %76, %77 : vector<16x1024xf32>
    %cst_34 = arith.constant 0.000000e+00 : f32
    %79 = vector.broadcast %cst_34 : f32 to vector<16x1024xf32>
    %80 = arith.maximumf %78, %79 : vector<16x1024xf32>
    %81 = arith.truncf %80 : vector<16x1024xf32> to vector<16x1024xbf16>
    %c576 = arith.constant 576 : index
    %c0_35 = arith.constant 0 : index
    %82 = vector.load %arg2[%c576, %c0_35] : memref<1600x64xbf16, #tpu.memory_space<vmem>>, vector<1024x64xbf16>
    %cst_36 = arith.constant dense<0.000000e+00> : vector<16x64xf32>
    %83 = tpu.matmul %81, %82, %cst_36 {dimension_numbers = #tpu.dot_dimension_numbers<[1], [0], [0], [1], [0, 0, 1, 1], [], []>} : vector<16x1024xbf16>, vector<1024x64xbf16>, vector<16x64xf32> -> vector<16x64xf32>
    %84 = arith.addf %71, %83 : vector<16x64xf32>
    %c3 = arith.constant 3 : index
    %c0_37 = arith.constant 0 : index
    %85 = vector.load %arg4[%c3, %c0_37] : memref<24x64xf32, #tpu.memory_space<vmem>>, vector<1x64xf32>
    %86 = vector.broadcast %85 : vector<1x64xf32> to vector<16x64xf32>
    %87 = arith.addf %84, %86 : vector<16x64xf32>
    %cst_38 = arith.constant dense<0.000000e+00> : vector<16xf32>
    %88 = vector.multi_reduction <add>, %87, %cst_38 [1] : vector<16x64xf32> to vector<16xf32>
    %89 = vector.shape_cast %88 : vector<16xf32> to vector<16x1xf32>
    %cst_39 = arith.constant 6.400000e+01 : f32
    %90 = vector.broadcast %cst_39 : f32 to vector<16x1xf32>
    %91 = arith.divf %89, %90 : vector<16x1xf32>
    %92 = arith.mulf %87, %87 : vector<16x64xf32>
    %cst_40 = arith.constant dense<0.000000e+00> : vector<16xf32>
    %93 = vector.multi_reduction <add>, %92, %cst_40 [1] : vector<16x64xf32> to vector<16xf32>
    %94 = vector.shape_cast %93 : vector<16xf32> to vector<16x1xf32>
    %cst_41 = arith.constant 6.400000e+01 : f32
    %95 = vector.broadcast %cst_41 : f32 to vector<16x1xf32>
    %96 = arith.divf %94, %95 : vector<16x1xf32>
    %97 = arith.mulf %91, %91 : vector<16x1xf32>
    %98 = arith.subf %96, %97 : vector<16x1xf32>
    %99 = vector.broadcast %91 : vector<16x1xf32> to vector<16x64xf32>
    %100 = arith.subf %87, %99 : vector<16x64xf32>
    %cst_42 = arith.constant 9.99999974E-6 : f32
    %101 = vector.broadcast %cst_42 : f32 to vector<16x1xf32>
    %102 = arith.addf %98, %101 : vector<16x1xf32>
    %103 = math.rsqrt %102 : vector<16x1xf32>
    %104 = vector.broadcast %103 : vector<16x1xf32> to vector<16x64xf32>
    %105 = arith.mulf %100, %104 : vector<16x64xf32>
    %c4 = arith.constant 4 : index
    %c0_43 = arith.constant 0 : index
    %106 = vector.load %arg4[%c4, %c0_43] : memref<24x64xf32, #tpu.memory_space<vmem>>, vector<1x64xf32>
    %107 = vector.broadcast %106 : vector<1x64xf32> to vector<16x64xf32>
    %108 = arith.mulf %105, %107 : vector<16x64xf32>
    %c5 = arith.constant 5 : index
    %c0_44 = arith.constant 0 : index
    %109 = vector.load %arg4[%c5, %c0_44] : memref<24x64xf32, #tpu.memory_space<vmem>>, vector<1x64xf32>
    %110 = vector.broadcast %109 : vector<1x64xf32> to vector<16x64xf32>
    %111 = arith.addf %108, %110 : vector<16x64xf32>
    %cst_45 = arith.constant 0.000000e+00 : f32
    %112 = vector.broadcast %cst_45 : f32 to vector<16x64xf32>
    %113 = arith.maximumf %111, %112 : vector<16x64xf32>
    %114 = tpu.concatenate %7, %113 in 1 : vector<16x64xf32>, vector<16x64xf32> -> vector<16x128xf32>
    %c0_46 = arith.constant 0 : index
    %c0_47 = arith.constant 0 : index
    %115 = vector.load %arg5[%c0_46, %c0_47] : memref<16x128xf32, #tpu.memory_space<vmem>>, vector<16x128xf32>
    tpu.vector_store %arg5[%c0_46, %c0_47], %114 {strides = array<i32>} : memref<16x128xf32, #tpu.memory_space<vmem>>, vector<16x128xf32>,
    return
  }
}

</mosaic_0001>

<llo_original>
// kernel: tpu_custom_call.1
$region0: #{tpu_custom_call.1}
  #allocation0 [shape = 'u32[]', space=smem, size = 0x4, offset = 0x4, fixed_abs, tag = 'smem constant byte address 0x4 - core index']
  #allocation1 [shape = 'u32[144,128]{1,0:T(1,128)}', space=vmem, size = 0x12000, scoped, tag = 'internal scratch']
  %s0 = inlined_call_operand.vmem [shape: s32[16,1], index: 0, kind: input, shape index: {}]
  %s1 = inlined_call_operand.vmem [shape: bf16[16,64], index: 1, kind: input, shape index: {}]
  %s2 = inlined_call_operand.vmem [shape: bf16[1600,64], index: 2, kind: input, shape index: {}]
  %s3 = inlined_call_operand.vmem [shape: bf16[65,1024], index: 3, kind: input, shape index: {}]
  %s4 = inlined_call_operand.vmem [shape: f32[24,64], index: 4, kind: input, shape index: {}]
  %s5 = inlined_call_operand.hbm [shape: f32[16,128], index: 5, kind: output, shape index: {}]
  %s6 = sld [smem:[#allocation0]]
  $region30: #{tpu_custom_call.1} parent=0
    _
  %s8 = ssub.s32 1, %s6
  %s9 = scalar_select 0, %s8, %s6
  $region1: #{tpu_custom_call.1} parent=0
    #allocation2 [shape = 'u8[8192]{0}', space=vmem, size = 0x2000, scoped, tag = 'output window, operand 0, single buffered']
    #allocation3 [shape = 's32[1]{0}', space=sflag, size = 0x4, scoped, tag = 'scoped memory for tpu_custom_call.1']
    %10 = vsyncpa [#allocation3], 0
    // Predicated region
    $region2: #{tpu_custom_call.1} parent=1 // pred_check
      _
    $region3: #{tpu_custom_call.1} parent=1 // pred_check_branch
      %12 = sbr.rel (0) target = $region5
    $region4: #{tpu_custom_call.1} parent=1 // pred_region
      _
    $region5: #{tpu_custom_call.1} parent=1 // pred_fallthru
      _
    // Predicated region
    $region6: #{tpu_custom_call.1} parent=1 // pred_check
      _
    $region7: #{tpu_custom_call.1} parent=1 // pred_check_branch
      %14 = sbr.rel (0) target = $region9
    $region8: #{tpu_custom_call.1} parent=1 // pred_region
      _
    $region9: #{tpu_custom_call.1} parent=1 // pred_fallthru
      _
    // Predicated region
    $region10: #{tpu_custom_call.1} parent=1 // pred_check
      _
    $region11: #{tpu_custom_call.1} parent=1 // pred_check_branch
      %16 = sbr.rel (0) target = $region13
    $region12: #{tpu_custom_call.1} parent=1 // pred_region
      _
    $region13: #{tpu_custom_call.1} parent=1 // pred_fallthru
      _
    // Predicated region
    $region14: #{tpu_custom_call.1} parent=1 // pred_check
      _
    $region15: #{tpu_custom_call.1} parent=1 // pred_check_branch
      %18 = sbr.rel (0) target = $region17
    $region16: #{tpu_custom_call.1} parent=1 // pred_region
      _
    $region17: #{tpu_custom_call.1} parent=1 // pred_fallthru
      _
    // Predicated region
    $region18: #{tpu_custom_call.1} parent=1 // pred_check
      _
    $region19: #{tpu_custom_call.1} parent=1 // pred_check_branch
      %20 = sbr.rel (0) target = $region21
    $region20: #{tpu_custom_call.1} parent=1 // pred_region
      _
    $region21: #{tpu_custom_call.1} parent=1 // pred_fallthru
      _
    %v22 = vld [vmem:[%s0] sm:$0xff]
    %v23 = vld [vmem:[%s0 + $0x8] sm:$0xff]
    %v24 = vlaneseq
    %v25 = vand.u32 %v24, 127
    %26 = vset.pattern.permute.xlu0 0
    %27 = vperm.xlu0 %26, %v22
    %v28 = vpop.permute.xlu0 %27
    %29 = vset.pattern.permute.xlu0 0
    %30 = vperm.xlu0 %29, %v23
    %v31 = vpop.permute.xlu0 %30
    %vm32 = vcmp.eq.s32.totalorder %v25, %v28
    %vm33 = vcmp.eq.s32.totalorder %v25, %v31
    %v34 = vsel %vm32, 1, 0
    %v35 = vsel %vm33, 1, 0
    %v36 = vcvt.s32.f32 %v34
    %v37 = vcvt.s32.f32 %v35
    %v38 = vld [vmem:[%s4 + $0x8] sm:$0xff]
    %v39 = vld [vmem:[%s4 + $0x10] sm:$0xff]
    %vm40 = vcmask 130048
    %v42 = vsel %vm40, %v36, 0
    %v45 = vsel %vm40, %v37, 0
    %47 = vmatprep.subr.mxu0 0.0
    %48 = vmatpush1.msra.mxu0 %v38
    %49 = vmatprep.subr.mxu0 0.0
    %50 = vmatpush1.msra.mxu0 %v39
    %51 = vmatprep.subr.mxu0 0.0
    %52 = vmatpush1.msra.mxu0 0.0
    %53 = vmatprep.subr.mxu0 0.0
    %54 = vmatpush1.msra.mxu0 0.0
    %55 = vmatprep.subr.mxu0 0.0
    %56 = vmatpush1.msra.mxu0 0.0
    %57 = vmatprep.subr.mxu0 0.0
    %58 = vmatpush1.msra.mxu0 0.0
    %59 = vmatprep.subr.mxu0 0.0
    %60 = vmatpush1.msra.mxu0 0.0
    %61 = vmatprep.subr.mxu0 0.0
    %62 = vmatpush1.msra.mxu0 0.0
    %63 = vmatprep.subr.mxu0 0.0
    %64 = vmatpush1.msra.mxu0 0.0
    %65 = vmatprep.subr.mxu0 0.0
    %66 = vmatpush1.msra.mxu0 0.0
    %67 = vmatprep.subr.mxu0 0.0
    %68 = vmatpush1.msra.mxu0 0.0
    %69 = vmatprep.subr.mxu0 0.0
    %70 = vmatpush1.msra.mxu0 0.0
    %71 = vmatprep.subr.mxu0 0.0
    %72 = vmatpush1.msra.mxu0 0.0
    %73 = vmatprep.subr.mxu0 0.0
    %74 = vmatpush1.msra.mxu0 0.0
    %75 = vmatprep.subr.mxu0 0.0
    %76 = vmatpush1.msra.mxu0 0.0
    %77 = vmatprep.subr.mxu0 0.0
    %78 = vmatpush1.msra.mxu0 0.0
    %79 = vmatprep.subr.mxu0 0.0
    %80 = vmatpush1.msra.mxu0 0.0
    %81 = vmatprep.subr.mxu0 0.0
    %82 = vmatpush1.msra.mxu0 0.0
    %83 = vmatprep.subr.mxu0 0.0
    %84 = vmatpush1.msra.mxu0 0.0
    %85 = vmatprep.subr.mxu0 0.0
    %86 = vmatpush1.msra.mxu0 0.0
    %87 = vmatprep.subr.mxu0 0.0
    %88 = vmatpush1.msra.mxu0 0.0
    %89 = vmatprep.subr.mxu0 0.0
    %90 = vmatpush1.msra.mxu0 0.0
    %91 = vmatprep.subr.mxu0 0.0
    %92 = vmatpush1.msra.mxu0 0.0
    %93 = vmatprep.subr.mxu0 0.0
    %94 = vmatpush1.msra.mxu0 0.0
    %95 = vmatprep.subr.mxu0 0.0
    %96 = vmatpush1.msra.mxu0 0.0
    %97 = vmatprep.subr.mxu0 0.0
    %98 = vmatpush1.msra.mxu0 0.0
    %99 = vmatprep.subr.mxu0 0.0
    %100 = vmatpush1.msra.mxu0 0.0
    %101 = vmatprep.subr.mxu0 0.0
    %102 = vmatpush1.msra.mxu0 0.0
    %103 = vmatprep.subr.mxu0 0.0
    %104 = vmatpush1.msra.mxu0 0.0
    %105 = vmatprep.subr.mxu0 0.0
    %106 = vmatpush1.msra.mxu0 0.0
    %107 = vmatprep.subr.mxu0 0.0
    %108 = vmatpush1.msra.mxu0 0.0
    %109 = vmatprep.subr.mxu0 0.0
    %110 = vmatpush1.msra.mxu0 0.0
    %111 = vmatprep.mubr.f32.mxu0 0.0
    %112 = vmatmul.mubr.f32.gmra.mrb[0].mxu0 %v42
    %v113 = vpop.f32.mrb[0].mxu0
    %v114 = vadd.f32 0.0, %v113
    %v115 = vpop.f32.mrb[0].mxu0
    %116 = vmatprep.mubr.f32.mxu0 0.0
    %117 = vmatmul.mubr.f32.gmra.mrb[0].mxu0 %v45
    %v118 = vpop.f32.mrb[0].mxu0
    %v119 = vadd.f32 0.0, %v118
    %v120 = vpop.f32.mrb[0].mxu0
    %121 = vdwg.mxu0
    %v122 = vpack.c.bf16 %v119, %v114
    %v123 = vld [vmem:[%s1] sm:$0xf]
    %v124 = vld [vmem:[%s1 + $0x4] sm:$0xf]
    %v127 = vunpack.c.l.b16 %v123
    %v128 = vunpack.c.l.b16 %v124
    %v129 = vpack.c.b16 %v128, %v127
    %131 = vrot.lane.b32.xlu0 %v122, 64
    %v132 = vpop.permute.xlu0 %131
    %vm133 = vcmask 523264
    %v136 = vsel %vm133, %v129, %v132
    %v138 = vld [vmem:[%s2] sm:$0xf]
    %v139 = vld [vmem:[%s2 + $0x4] sm:$0xf]
    %v140 = vld [vmem:[%s2 + $0x8] sm:$0xf]
    %v141 = vld [vmem:[%s2 + $0xc] sm:$0xf]
    %v142 = vld [vmem:[%s2 + $0x10] sm:$0xf]
    %v143 = vld [vmem:[%s2 + $0x14] sm:$0xf]
    %v144 = vld [vmem:[%s2 + $0x18] sm:$0xf]
    %v145 = vld [vmem:[%s2 + $0x1c] sm:$0xf]
    %v146 = vld [vmem:[%s2 + $0x20] sm:$0xf]
    %v147 = vld [vmem:[%s2 + $0x24] sm:$0xf]
    %v148 = vld [vmem:[%s2 + $0x28] sm:$0xf]
    %v149 = vld [vmem:[%s2 + $0x2c] sm:$0xf]
    %v150 = vld [vmem:[%s2 + $0x30] sm:$0xf]
    %v151 = vld [vmem:[%s2 + $0x34] sm:$0xf]
    %v152 = vld [vmem:[%s2 + $0x38] sm:$0xf]
    %v153 = vld [vmem:[%s2 + $0x3c] sm:$0xf]
    %v154 = vld [vmem:[%s4] sm:$0x1]
    %v155 = vlaneseq
    %v156 = vshrl.u32 %v155, 7
    %v157 = vsub.s32 0, %v156
    %v158 = vrot.slane %v154, %v157
    %v175 = vunpack.c.l.b16 %v138
    %v176 = vunpack.c.l.b16 %v139
    %v177 = vunpack.c.l.b16 %v140
    %v178 = vunpack.c.l.b16 %v141
    %v179 = vunpack.c.l.b16 %v142
    %v180 = vunpack.c.l.b16 %v143
    %v181 = vunpack.c.l.b16 %v144
    %v182 = vunpack.c.l.b16 %v145
    %v183 = vunpack.c.l.b16 %v146
    %v184 = vunpack.c.l.b16 %v147
    %v185 = vunpack.c.l.b16 %v148
    %v186 = vunpack.c.l.b16 %v149
    %v187 = vunpack.c.l.b16 %v150
    %v188 = vunpack.c.l.b16 %v151
    %v189 = vunpack.c.l.b16 %v152
    %v190 = vunpack.c.l.b16 %v153
    %v191 = vpack.c.b16 %v176, %v175
    %v192 = vpack.c.b16 %v178, %v177
    %v193 = vpack.c.b16 %v180, %v179
    %v194 = vpack.c.b16 %v182, %v181
    %v195 = vpack.c.b16 %v184, %v183
    %v196 = vpack.c.b16 %v186, %v185
    %v197 = vpack.c.b16 %v188, %v187
    %v198 = vpack.c.b16 %v190, %v189
    %207 = vmatprep.subr.bf16.mxu0 0
    %208 = vmatpush1.bf16.msra.mxu0 %v191
    %209 = vmatprep.subr.bf16.mxu0 0
    %210 = vmatpush1.bf16.msra.mxu0 %v192
    %211 = vmatprep.subr.bf16.mxu0 0
    %212 = vmatpush1.bf16.msra.mxu0 %v193
    %213 = vmatprep.subr.bf16.mxu0 0
    %214 = vmatpush1.bf16.msra.mxu0 %v194
    %215 = vmatprep.subr.bf16.mxu0 0
    %216 = vmatpush1.bf16.msra.mxu0 %v195
    %217 = vmatprep.subr.bf16.mxu0 0
    %218 = vmatpush1.bf16.msra.mxu0 %v196
    %219 = vmatprep.subr.bf16.mxu0 0
    %220 = vmatpush1.bf16.msra.mxu0 %v197
    %221 = vmatprep.subr.bf16.mxu0 0
    %222 = vmatpush1.bf16.msra.mxu0 %v198
    %223 = vmatprep.subr.bf16.mxu0 0
    %224 = vmatpush1.bf16.msra.mxu0 0
    %225 = vmatprep.subr.bf16.mxu0 0
    %226 = vmatpush1.bf16.msra.mxu0 0
    %227 = vmatprep.subr.bf16.mxu0 0
    %228 = vmatpush1.bf16.msra.mxu0 0
    %229 = vmatprep.subr.bf16.mxu0 0
    %230 = vmatpush1.bf16.msra.mxu0 0
    %231 = vmatprep.subr.bf16.mxu0 0
    %232 = vmatpush1.bf16.msra.mxu0 0
    %233 = vmatprep.subr.bf16.mxu0 0
    %234 = vmatpush1.bf16.msra.mxu0 0
    %235 = vmatprep.subr.bf16.mxu0 0
    %236 = vmatpush1.bf16.msra.mxu0 0
    %237 = vmatprep.subr.bf16.mxu0 0
    %238 = vmatpush1.bf16.msra.mxu0 0
    %239 = vmatprep.mubr.bf16.mxu0 0
    %240 = vmatmul.mubr.bf16.gmra.mrb[0].mxu0 %v136
    %v241 = vpop.f32.mrb[0].mxu0
    %v242 = vadd.f32 %v158, %v241
    %v243 = vpop.f32.mrb[0].mxu0
    %v244 = vpop.f32.mrb[0].mxu0
    %v245 = vadd.f32 %v158, %v244
    %v246 = vpop.f32.mrb[0].mxu0
    %247 = vdwg.mxu0
    %v248 = vmax.f32 %v114, 0.0
    %v249 = vmax.f32 %v119, 0.0
    %v250 = vpack.c.bf16 %v249, %v248
    %v251 = vmax.f32 %v242, 0.0
    %v252 = vmax.f32 %v245, 0.0
    %v253 = vpack.c.bf16 %v252, %v251
    %v254 = vld [vmem:[%s2 + $0x40] sm:$0xf]
    %v255 = vld [vmem:[%s2 + $0x44] sm:$0xf]
    %v256 = vld [vmem:[%s2 + $0x48] sm:$0xf]
    %v257 = vld [vmem:[%s2 + $0x4c] sm:$0xf]
    %v258 = vld [vmem:[%s2 + $0x50] sm:$0xf]
    %v259 = vld [vmem:[%s2 + $0x54] sm:$0xf]
    %v260 = vld [vmem:[%s2 + $0x58] sm:$0xf]
    %v261 = vld [vmem:[%s2 + $0x5c] sm:$0xf]
    %v270 = vunpack.c.l.b16 %v254
    %v271 = vunpack.c.l.b16 %v255
    %v272 = vunpack.c.l.b16 %v256
    %v273 = vunpack.c.l.b16 %v257
    %v274 = vunpack.c.l.b16 %v258
    %v275 = vunpack.c.l.b16 %v259
    %v276 = vunpack.c.l.b16 %v260
    %v277 = vunpack.c.l.b16 %v261
    %v278 = vpack.c.b16 %v271, %v270
    %v279 = vpack.c.b16 %v273, %v272
    %v280 = vpack.c.b16 %v275, %v274
    %v281 = vpack.c.b16 %v277, %v276
    %v286 = vsel %vm133, %v129, 0
    %288 = vmatprep.subr.bf16.mxu0 0
    %289 = vmatpush1.bf16.msra.mxu0 %v278
    %290 = vmatprep.subr.bf16.mxu0 0
    %291 = vmatpush1.bf16.msra.mxu0 %v279
    %292 = vmatprep.subr.bf16.mxu0 0
    %293 = vmatpush1.bf16.msra.mxu0 %v280
    %294 = vmatprep.subr.bf16.mxu0 0
    %295 = vmatpush1.bf16.msra.mxu0 %v281
    %296 = vmatprep.subr.bf16.mxu0 0
    %297 = vmatpush1.bf16.msra.mxu0 0
    %298 = vmatprep.subr.bf16.mxu0 0
    %299 = vmatpush1.bf16.msra.mxu0 0
    %300 = vmatprep.subr.bf16.mxu0 0
    %301 = vmatpush1.bf16.msra.mxu0 0
    %302 = vmatprep.subr.bf16.mxu0 0
    %303 = vmatpush1.bf16.msra.mxu0 0
    %304 = vmatprep.subr.bf16.mxu0 0
    %305 = vmatpush1.bf16.msra.mxu0 0
    %306 = vmatprep.subr.bf16.mxu0 0
    %307 = vmatpush1.bf16.msra.mxu0 0
    %308 = vmatprep.subr.bf16.mxu0 0
    %309 = vmatpush1.bf16.msra.mxu0 0
    %310 = vmatprep.subr.bf16.mxu0 0
    %311 = vmatpush1.bf16.msra.mxu0 0
    %312 = vmatprep.subr.bf16.mxu0 0
    %313 = vmatpush1.bf16.msra.mxu0 0
    %314 = vmatprep.subr.bf16.mxu0 0
    %315 = vmatpush1.bf16.msra.mxu0 0
    %316 = vmatprep.subr.bf16.mxu0 0
    %317 = vmatpush1.bf16.msra.mxu0 0
    %318 = vmatprep.subr.bf16.mxu0 0
    %319 = vmatpush1.bf16.msra.mxu0 0
    %320 = vmatprep.mubr.bf16.mxu0 0
    %321 = vmatmul.mubr.bf16.gmra.mrb[0].mxu0 %v286
    %v322 = vpop.f32.mrb[0].mxu0
    %v323 = vadd.f32 0.0, %v322
    %v324 = vpop.f32.mrb[0].mxu0
    %v325 = vpop.f32.mrb[0].mxu0
    %v326 = vadd.f32 0.0, %v325
    %v327 = vpop.f32.mrb[0].mxu0
    %328 = vdwg.mxu0
    %v329 = vld [vmem:[%s2 + $0x60] sm:$0xf]
    %v330 = vld [vmem:[%s2 + $0x64] sm:$0xf]
    %v331 = vld [vmem:[%s2 + $0x68] sm:$0xf]
    %v332 = vld [vmem:[%s2 + $0x6c] sm:$0xf]
    %v333 = vld [vmem:[%s2 + $0x70] sm:$0xf]
    %v334 = vld [vmem:[%s2 + $0x74] sm:$0xf]
    %v335 = vld [vmem:[%s2 + $0x78] sm:$0xf]
    %v336 = vld [vmem:[%s2 + $0x7c] sm:$0xf]
    %v345 = vunpack.c.l.b16 %v329
    %v346 = vunpack.c.l.b16 %v330
    %v347 = vunpack.c.l.b16 %v331
    %v348 = vunpack.c.l.b16 %v332
    %v349 = vunpack.c.l.b16 %v333
    %v350 = vunpack.c.l.b16 %v334
    %v351 = vunpack.c.l.b16 %v335
    %v352 = vunpack.c.l.b16 %v336
    %v353 = vpack.c.b16 %v346, %v345
    %v354 = vpack.c.b16 %v348, %v347
    %v355 = vpack.c.b16 %v350, %v349
    %v356 = vpack.c.b16 %v352, %v351
    %v362 = vsel %vm133, %v250, 0
    %364 = vmatprep.subr.bf16.mxu0 0
    %365 = vmatpush1.bf16.msra.mxu0 %v353
    %366 = vmatprep.subr.bf16.mxu0 0
    %367 = vmatpush1.bf16.msra.mxu0 %v354
    %368 = vmatprep.subr.bf16.mxu0 0
    %369 = vmatpush1.bf16.msra.mxu0 %v355
    %370 = vmatprep.subr.bf16.mxu0 0
    %371 = vmatpush1.bf16.msra.mxu0 %v356
    %372 = vmatprep.subr.bf16.mxu0 0
    %373 = vmatpush1.bf16.msra.mxu0 0
    %374 = vmatprep.subr.bf16.mxu0 0
    %375 = vmatpush1.bf16.msra.mxu0 0
    %376 = vmatprep.subr.bf16.mxu0 0
    %377 = vmatpush1.bf16.msra.mxu0 0
    %378 = vmatprep.subr.bf16.mxu0 0
    %379 = vmatpush1.bf16.msra.mxu0 0
    %380 = vmatprep.subr.bf16.mxu0 0
    %381 = vmatpush1.bf16.msra.mxu0 0
    %382 = vmatprep.subr.bf16.mxu0 0
    %383 = vmatpush1.bf16.msra.mxu0 0
    %384 = vmatprep.subr.bf16.mxu0 0
    %385 = vmatpush1.bf16.msra.mxu0 0
    %386 = vmatprep.subr.bf16.mxu0 0
    %387 = vmatpush1.bf16.msra.mxu0 0
    %388 = vmatprep.subr.bf16.mxu0 0
    %389 = vmatpush1.bf16.msra.mxu0 0
    %390 = vmatprep.subr.bf16.mxu0 0
    %391 = vmatpush1.bf16.msra.mxu0 0
    %392 = vmatprep.subr.bf16.mxu0 0
    %393 = vmatpush1.bf16.msra.mxu0 0
    %394 = vmatprep.subr.bf16.mxu0 0
    %395 = vmatpush1.bf16.msra.mxu0 0
    %396 = vmatprep.mubr.bf16.mxu0 0
    %397 = vmatmul.mubr.bf16.gmra.mrb[0].mxu0 %v362
    %v398 = vpop.f32.mrb[0].mxu0
    %v399 = vadd.f32 0.0, %v398
    %v400 = vpop.f32.mrb[0].mxu0
    %v401 = vpop.f32.mrb[0].mxu0
    %v402 = vadd.f32 0.0, %v401
    %v403 = vpop.f32.mrb[0].mxu0
    %404 = vdwg.mxu0
    %v405 = vld [vmem:[%s2 + $0x80] sm:$0xf]
    %v406 = vld [vmem:[%s2 + $0x84] sm:$0xf]
    %v407 = vld [vmem:[%s2 + $0x88] sm:$0xf]
    %v408 = vld [vmem:[%s2 + $0x8c] sm:$0xf]
    %v409 = vld [vmem:[%s2 + $0x90] sm:$0xf]
    %v410 = vld [vmem:[%s2 + $0x94] sm:$0xf]
    %v411 = vld [vmem:[%s2 + $0x98] sm:$0xf]
    %v412 = vld [vmem:[%s2 + $0x9c] sm:$0xf]
    %v421 = vunpack.c.l.b16 %v405
    %v422 = vunpack.c.l.b16 %v406
    %v423 = vunpack.c.l.b16 %v407
    %v424 = vunpack.c.l.b16 %v408
    %v425 = vunpack.c.l.b16 %v409
    %v426 = vunpack.c.l.b16 %v410
    %v427 = vunpack.c.l.b16 %v411
    %v428 = vunpack.c.l.b16 %v412
    %v429 = vpack.c.b16 %v422, %v421
    %v430 = vpack.c.b16 %v424, %v423
    %v431 = vpack.c.b16 %v426, %v425
    %v432 = vpack.c.b16 %v428, %v427
    %v438 = vsel %vm133, %v253, 0
    %440 = vmatprep.subr.bf16.mxu0 0
    %441 = vmatpush1.bf16.msra.mxu0 %v429
    %442 = vmatprep.subr.bf16.mxu0 0
    %443 = vmatpush1.bf16.msra.mxu0 %v430
    %444 = vmatprep.subr.bf16.mxu0 0
    %445 = vmatpush1.bf16.msra.mxu0 %v431
    %446 = vmatprep.subr.bf16.mxu0 0
    %447 = vmatpush1.bf16.msra.mxu0 %v432
    %448 = vmatprep.subr.bf16.mxu0 0
    %449 = vmatpush1.bf16.msra.mxu0 0
    %450 = vmatprep.subr.bf16.mxu0 0
    %451 = vmatpush1.bf16.msra.mxu0 0
    %452 = vmatprep.subr.bf16.mxu0 0
    %453 = vmatpush1.bf16.msra.mxu0 0
    %454 = vmatprep.subr.bf16.mxu0 0
    %455 = vmatpush1.bf16.msra.mxu0 0
    %456 = vmatprep.subr.bf16.mxu0 0
    %457 = vmatpush1.bf16.msra.mxu0 0
    %458 = vmatprep.subr.bf16.mxu0 0
    %459 = vmatpush1.bf16.msra.mxu0 0
    %460 = vmatprep.subr.bf16.mxu0 0
    %461 = vmatpush1.bf16.msra.mxu0 0
    %462 = vmatprep.subr.bf16.mxu0 0
    %463 = vmatpush1.bf16.msra.mxu0 0
    %464 = vmatprep.subr.bf16.mxu0 0
    %465 = vmatpush1.bf16.msra.mxu0 0
    %466 = vmatprep.subr.bf16.mxu0 0
    %467 = vmatpush1.bf16.msra.mxu0 0
    %468 = vmatprep.subr.bf16.mxu0 0
    %469 = vmatpush1.bf16.msra.mxu0 0
    %470 = vmatprep.subr.bf16.mxu0 0
    %471 = vmatpush1.bf16.msra.mxu0 0
    %472 = vmatprep.mubr.bf16.mxu0 0
    %473 = vmatmul.mubr.bf16.gmra.mrb[0].mxu0 %v438
    %v474 = vpop.f32.mrb[0].mxu0
    %v475 = vadd.f32 0.0, %v474
    %v476 = vpop.f32.mrb[0].mxu0
    %v477 = vpop.f32.mrb[0].mxu0
    %v478 = vadd.f32 0.0, %v477
    %v479 = vpop.f32.mrb[0].mxu0
    %480 = vdwg.mxu0
    %v481 = vpack.c.bf16 %v326, %v323
    %v482 = vpack.c.bf16 %v402, %v399
    %v484 = vsel %vm133, %v481, 0
    %v487 = vsel %vm133, %v482, 0
    %489 = vmatprep.subr.bf16.mxu0 0
    %490 = vmatpush1.bf16.xpose.msra.mxu0 %v487
    %491 = vmatprep.subr.bf16.mxu0 0
    %492 = vmatpush1.bf16.xpose.msra.mxu0 0
    %493 = vmatprep.subr.bf16.mxu0 0
    %494 = vmatpush1.bf16.xpose.msra.mxu0 0
    %495 = vmatprep.subr.bf16.mxu0 0
    %496 = vmatpush1.bf16.xpose.msra.mxu0 0
    %497 = vmatprep.subr.bf16.mxu0 0
    %498 = vmatpush1.bf16.xpose.msra.mxu0 0
    %499 = vmatprep.subr.bf16.mxu0 0
    %500 = vmatpush1.bf16.xpose.msra.mxu0 0
    %501 = vmatprep.subr.bf16.mxu0 0
    %502 = vmatpush1.bf16.xpose.msra.mxu0 0
    %503 = vmatprep.subr.bf16.mxu0 0
    %504 = vmatpush1.bf16.xpose.msra.mxu0 0
    %505 = vmatprep.subr.bf16.mxu0 0
    %506 = vmatpush1.bf16.xpose.msra.mxu0 0
    %507 = vmatprep.subr.bf16.mxu0 0
    %508 = vmatpush1.bf16.xpose.msra.mxu0 0
    %509 = vmatprep.subr.bf16.mxu0 0
    %510 = vmatpush1.bf16.xpose.msra.mxu0 0
    %511 = vmatprep.subr.bf16.mxu0 0
    %512 = vmatpush1.bf16.xpose.msra.mxu0 0
    %513 = vmatprep.subr.bf16.mxu0 0
    %514 = vmatpush1.bf16.xpose.msra.mxu0 0
    %515 = vmatprep.subr.bf16.mxu0 0
    %516 = vmatpush1.bf16.xpose.msra.mxu0 0
    %517 = vmatprep.subr.bf16.mxu0 0
    %518 = vmatpush1.bf16.xpose.msra.mxu0 0
    %519 = vmatprep.subr.bf16.mxu0 0
    %520 = vmatpush1.bf16.xpose.msra.mxu0 0
    %521 = vmatprep.mubr.bf16.mxu0 0
    %522 = vmatmul.mubr.bf16.gmra.mrb[0].mxu0 %v484
    %v523 = vpop.f32.mrb[0].mxu0
    %v524 = vadd.f32 0.0, %v523
    %v525 = vpop.f32.mrb[0].mxu0
    %v526 = vpop.f32.mrb[0].mxu0
    %v527 = vadd.f32 0.0, %v526
    %v528 = vpop.f32.mrb[0].mxu0
    %529 = vdwg.mxu0
    %v530 = vld [vmem:[%s4 + $0x6] sm:$0x1]
    %v531 = vlaneseq
    %v532 = vshrl.u32 %v531, 7
    %v533 = vsub.s32 0, %v532
    %v534 = vrot.slane %v530, %v533
    %v535 = vmul.f32 %v323, %v534
    %v536 = vmul.f32 %v326, %v534
    %v537 = vsel %vm133, %v535, 0.0
    %538 = vadd.xlane.f32.xlu0 %v537
    %v539 = vpop.xlane.xlu0 %538
    %v540 = vsel %vm133, %v536, 0.0
    %541 = vadd.xlane.f32.xlu0 %v540
    %v542 = vpop.xlane.xlu0 %541
    %v543 = vsel %vm40, %v524, -inf
    %544 = vmax.xlane.f32.xlu0 %v543
    %v545 = vpop.xlane.xlu0 %544
    %v546 = vsel %vm40, %v527, -inf
    %547 = vmax.xlane.f32.xlu0 %v546
    %v548 = vpop.xlane.xlu0 %547
    %v549 = vmax.f32 %v545, %v539
    %v550 = vmax.f32 %v548, %v542
    %v551 = vsub.f32 %v524, %v549
    %v552 = vsub.f32 %v527, %v550
    %v553 = vmul.f32 %v551, 1.442695
    %v554 = vpow.pop %v553
    %v555 = vmul.f32 %v552, 1.442695
    %v556 = vpow.pop %v555
    %v557 = vsub.f32 %v539, %v549
    %v558 = vsub.f32 %v542, %v550
    %v559 = vmul.f32 %v557, 1.442695
    %v560 = vpow.pop %v559
    %v561 = vmul.f32 %v558, 1.442695
    %v562 = vpow.pop %v561
    %v563 = vsel %vm40, %v554, 0.0
    %564 = vadd.xlane.f32.xlu0 %v563
    %v565 = vpop.xlane.xlu0 %564
    %v566 = vsel %vm40, %v556, 0.0
    %567 = vadd.xlane.f32.xlu0 %v566
    %v568 = vpop.xlane.xlu0 %567
    %v569 = vadd.f32 %v565, %v560
    %v570 = vadd.f32 %v568, %v562
    %v571 = vpack.c.bf16 %v556, %v554
    %v572 = vpack.c.bf16 %v478, %v475
    %v574 = vsel %vm40, %v571, 0
    %576 = vmatprep.subr.bf16.mxu0 0
    %577 = vmatpush1.bf16.msra.mxu0 %v572
    %578 = vmatprep.subr.bf16.mxu0 0
    %579 = vmatpush1.bf16.msra.mxu0 0
    %580 = vmatprep.subr.bf16.mxu0 0
    %581 = vmatpush1.bf16.msra.mxu0 0
    %582 = vmatprep.subr.bf16.mxu0 0
    %583 = vmatpush1.bf16.msra.mxu0 0
    %584 = vmatprep.subr.bf16.mxu0 0
    %585 = vmatpush1.bf16.msra.mxu0 0
    %586 = vmatprep.subr.bf16.mxu0 0
    %587 = vmatpush1.bf16.msra.mxu0 0
    %588 = vmatprep.subr.bf16.mxu0 0
    %589 = vmatpush1.bf16.msra.mxu0 0
    %590 = vmatprep.subr.bf16.mxu0 0
    %591 = vmatpush1.bf16.msra.mxu0 0
    %592 = vmatprep.subr.bf16.mxu0 0
    %593 = vmatpush1.bf16.msra.mxu0 0
    %594 = vmatprep.subr.bf16.mxu0 0
    %595 = vmatpush1.bf16.msra.mxu0 0
    %596 = vmatprep.subr.bf16.mxu0 0
    %597 = vmatpush1.bf16.msra.mxu0 0
    %598 = vmatprep.subr.bf16.mxu0 0
    %599 = vmatpush1.bf16.msra.mxu0 0
    %600 = vmatprep.subr.bf16.mxu0 0
    %601 = vmatpush1.bf16.msra.mxu0 0
    %602 = vmatprep.subr.bf16.mxu0 0
    %603 = vmatpush1.bf16.msra.mxu0 0
    %604 = vmatprep.subr.bf16.mxu0 0
    %605 = vmatpush1.bf16.msra.mxu0 0
    %606 = vmatprep.subr.bf16.mxu0 0
    %607 = vmatpush1.bf16.msra.mxu0 0
    %608 = vmatprep.mubr.bf16.mxu0 0
    %609 = vmatmul.mubr.bf16.gmra.mrb[0].mxu0 %v574
    %v610 = vpop.f32.mrb[0].mxu0
    %v611 = vadd.f32 0.0, %v610
    %v612 = vpop.f32.mrb[0].mxu0
    %v613 = vpop.f32.mrb[0].mxu0
    %v614 = vadd.f32 0.0, %v613
    %v615 = vpop.f32.mrb[0].mxu0
    %616 = vdwg.mxu0
    %v617 = vrcp.pop %v569
    %v618 = vrcp.pop %v570
    %v619 = vmul.f32 %v611, %v617
    %v620 = vmul.f32 %v614, %v618
    %v621 = vunpack.c.l.bf16 %v123
    %v622 = vunpack.c.l.bf16 %v124
    %v623 = vmul.f32 %v619, %v621
    %v624 = vmul.f32 %v620, %v622
    %v625 = vsub.f32 %v621, %v619
    %v626 = vsub.f32 %v622, %v620
    %629 = vrot.lane.b32.xlu0 %v625, 64
    %v630 = vpop.permute.xlu0 %629
    %631 = vrot.lane.b32.xlu0 %v626, 64
    %v632 = vpop.permute.xlu0 %631
    %v635 = vsel %vm133, %v623, %v630
    %v636 = vsel %vm133, %v624, %v632
    %v637 = vpack.c.bf16 %v636, %v635
    %v638 = vld [vmem:[%s2 + $0xa0] sm:$0xf]
    %v639 = vld [vmem:[%s2 + $0xa4] sm:$0xf]
    %v640 = vld [vmem:[%s2 + $0xa8] sm:$0xf]
    %v641 = vld [vmem:[%s2 + $0xac] sm:$0xf]
    %v642 = vld [vmem:[%s2 + $0xb0] sm:$0xf]
    %v643 = vld [vmem:[%s2 + $0xb4] sm:$0xf]
    %v644 = vld [vmem:[%s2 + $0xb8] sm:$0xf]
    %v645 = vld [vmem:[%s2 + $0xbc] sm:$0xf]
    %v646 = vld [vmem:[%s2 + $0xc0] sm:$0xf]
    %v647 = vld [vmem:[%s2 + $0xc4] sm:$0xf]
    %v648 = vld [vmem:[%s2 + $0xc8] sm:$0xf]
    %v649 = vld [vmem:[%s2 + $0xcc] sm:$0xf]
    %v650 = vld [vmem:[%s2 + $0xd0] sm:$0xf]
    %v651 = vld [vmem:[%s2 + $0xd4] sm:$0xf]
    %v652 = vld [vmem:[%s2 + $0xd8] sm:$0xf]
    %v653 = vld [vmem:[%s2 + $0xdc] sm:$0xf]
    %v654 = vld [vmem:[%s4 + $0x1] sm:$0x1]
    %v655 = vlaneseq
    %v656 = vshrl.u32 %v655, 7
    %v657 = vsub.s32 0, %v656
    %v658 = vrot.slane %v654, %v657
    %v675 = vunpack.c.l.b16 %v638
    %v676 = vunpack.c.l.b16 %v639
    %v677 = vunpack.c.l.b16 %v640
    %v678 = vunpack.c.l.b16 %v641
    %v679 = vunpack.c.l.b16 %v642
    %v680 = vunpack.c.l.b16 %v643
    %v681 = vunpack.c.l.b16 %v644
    %v682 = vunpack.c.l.b16 %v645
    %v683 = vunpack.c.l.b16 %v646
    %v684 = vunpack.c.l.b16 %v647
    %v685 = vunpack.c.l.b16 %v648
    %v686 = vunpack.c.l.b16 %v649
    %v687 = vunpack.c.l.b16 %v650
    %v688 = vunpack.c.l.b16 %v651
    %v689 = vunpack.c.l.b16 %v652
    %v690 = vunpack.c.l.b16 %v653
    %v691 = vpack.c.b16 %v676, %v675
    %v692 = vpack.c.b16 %v678, %v677
    %v693 = vpack.c.b16 %v680, %v679
    %v694 = vpack.c.b16 %v682, %v681
    %v695 = vpack.c.b16 %v684, %v683
    %v696 = vpack.c.b16 %v686, %v685
    %v697 = vpack.c.b16 %v688, %v687
    %v698 = vpack.c.b16 %v690, %v689
    %707 = vmatprep.subr.bf16.mxu0 0
    %708 = vmatpush1.bf16.msra.mxu0 %v691
    %709 = vmatprep.subr.bf16.mxu0 0
    %710 = vmatpush1.bf16.msra.mxu0 %v692
    %711 = vmatprep.subr.bf16.mxu0 0
    %712 = vmatpush1.bf16.msra.mxu0 %v693
    %713 = vmatprep.subr.bf16.mxu0 0
    %714 = vmatpush1.bf16.msra.mxu0 %v694
    %715 = vmatprep.subr.bf16.mxu0 0
    %716 = vmatpush1.bf16.msra.mxu0 %v695
    %717 = vmatprep.subr.bf16.mxu0 0
    %718 = vmatpush1.bf16.msra.mxu0 %v696
    %719 = vmatprep.subr.bf16.mxu0 0
    %720 = vmatpush1.bf16.msra.mxu0 %v697
    %721 = vmatprep.subr.bf16.mxu0 0
    %722 = vmatpush1.bf16.msra.mxu0 %v698
    %723 = vmatprep.subr.bf16.mxu0 0
    %724 = vmatpush1.bf16.msra.mxu0 0
    %725 = vmatprep.subr.bf16.mxu0 0
    %726 = vmatpush1.bf16.msra.mxu0 0
    %727 = vmatprep.subr.bf16.mxu0 0
    %728 = vmatpush1.bf16.msra.mxu0 0
    %729 = vmatprep.subr.bf16.mxu0 0
    %730 = vmatpush1.bf16.msra.mxu0 0
    %731 = vmatprep.subr.bf16.mxu0 0
    %732 = vmatpush1.bf16.msra.mxu0 0
    %733 = vmatprep.subr.bf16.mxu0 0
    %734 = vmatpush1.bf16.msra.mxu0 0
    %735 = vmatprep.subr.bf16.mxu0 0
    %736 = vmatpush1.bf16.msra.mxu0 0
    %737 = vmatprep.subr.bf16.mxu0 0
    %738 = vmatpush1.bf16.msra.mxu0 0
    %739 = vmatprep.mubr.bf16.mxu0 0
    %740 = vmatmul.mubr.bf16.gmra.mrb[0].mxu0 %v637
    %v741 = vpop.f32.mrb[0].mxu0
    %v742 = vadd.f32 %v658, %v741
    %v743 = vpop.f32.mrb[0].mxu0
    %v744 = vpop.f32.mrb[0].mxu0
    %v745 = vadd.f32 %v658, %v744
    %v746 = vpop.f32.mrb[0].mxu0
    %747 = vdwg.mxu0
    %v748 = vmax.f32 %v742, 0.0
    %v749 = vmax.f32 %v745, 0.0
    %v750 = vpack.c.bf16 %v749, %v748
    %751 = vrot.lane.b32.xlu0 %v129, 64
    %v752 = vpop.permute.xlu0 %751
    %v755 = vsel %vm133, %v750, %v752
    %v757 = vld [vmem:[%s2 + $0xe0] sm:$0xf]
    %v758 = vld [vmem:[%s2 + $0xe4] sm:$0xf]
    %v759 = vld [vmem:[%s2 + $0xe8] sm:$0xf]
    %v760 = vld [vmem:[%s2 + $0xec] sm:$0xf]
    %v761 = vld [vmem:[%s2 + $0xf0] sm:$0xf]
    %v762 = vld [vmem:[%s2 + $0xf4] sm:$0xf]
    %v763 = vld [vmem:[%s2 + $0xf8] sm:$0xf]
    %v764 = vld [vmem:[%s2 + $0xfc] sm:$0xf]
    %v765 = vld [vmem:[%s2 + $0x100] sm:$0xf]
    %v766 = vld [vmem:[%s2 + $0x104] sm:$0xf]
    %v767 = vld [vmem:[%s2 + $0x108] sm:$0xf]
    %v768 = vld [vmem:[%s2 + $0x10c] sm:$0xf]
    %v769 = vld [vmem:[%s2 + $0x110] sm:$0xf]
    %v770 = vld [vmem:[%s2 + $0x114] sm:$0xf]
    %v771 = vld [vmem:[%s2 + $0x118] sm:$0xf]
    %v772 = vld [vmem:[%s2 + $0x11c] sm:$0xf]
    %v773 = vld [vmem:[%s4 + $0x2] sm:$0x1]
    %v774 = vlaneseq
    %v775 = vshrl.u32 %v774, 7
    %v776 = vsub.s32 0, %v775
    %v777 = vrot.slane %v773, %v776
    %v794 = vunpack.c.l.b16 %v757
    %v795 = vunpack.c.l.b16 %v758
    %v796 = vunpack.c.l.b16 %v759
    %v797 = vunpack.c.l.b16 %v760
    %v798 = vunpack.c.l.b16 %v761
    %v799 = vunpack.c.l.b16 %v762
    %v800 = vunpack.c.l.b16 %v763
    %v801 = vunpack.c.l.b16 %v764
    %v802 = vunpack.c.l.b16 %v765
    %v803 = vunpack.c.l.b16 %v766
    %v804 = vunpack.c.l.b16 %v767
    %v805 = vunpack.c.l.b16 %v768
    %v806 = vunpack.c.l.b16 %v769
    %v807 = vunpack.c.l.b16 %v770
    %v808 = vunpack.c.l.b16 %v771
    %v809 = vunpack.c.l.b16 %v772
    %v810 = vpack.c.b16 %v795, %v794
    %v811 = vpack.c.b16 %v797, %v796
    %v812 = vpack.c.b16 %v799, %v798
    %v813 = vpack.c.b16 %v801, %v800
    %v814 = vpack.c.b16 %v803, %v802
    %v815 = vpack.c.b16 %v805, %v804
    %v816 = vpack.c.b16 %v807, %v806
    %v817 = vpack.c.b16 %v809, %v808
    %826 = vmatprep.subr.bf16.mxu0 0
    %827 = vmatpush1.bf16.msra.mxu0 %v810
    %828 = vmatprep.subr.bf16.mxu0 0
    %829 = vmatpush1.bf16.msra.mxu0 %v811
    %830 = vmatprep.subr.bf16.mxu0 0
    %831 = vmatpush1.bf16.msra.mxu0 %v812
    %832 = vmatprep.subr.bf16.mxu0 0
    %833 = vmatpush1.bf16.msra.mxu0 %v813
    %834 = vmatprep.subr.bf16.mxu0 0
    %835 = vmatpush1.bf16.msra.mxu0 %v814
    %836 = vmatprep.subr.bf16.mxu0 0
    %837 = vmatpush1.bf16.msra.mxu0 %v815
    %838 = vmatprep.subr.bf16.mxu0 0
    %839 = vmatpush1.bf16.msra.mxu0 %v816
    %840 = vmatprep.subr.bf16.mxu0 0
    %841 = vmatpush1.bf16.msra.mxu0 %v817
    %842 = vmatprep.subr.bf16.mxu0 0
    %843 = vmatpush1.bf16.msra.mxu0 0
    %844 = vmatprep.subr.bf16.mxu0 0
    %845 = vmatpush1.bf16.msra.mxu0 0
    %846 = vmatprep.subr.bf16.mxu0 0
    %847 = vmatpush1.bf16.msra.mxu0 0
    %848 = vmatprep.subr.bf16.mxu0 0
    %849 = vmatpush1.bf16.msra.mxu0 0
    %850 = vmatprep.subr.bf16.mxu0 0
    %851 = vmatpush1.bf16.msra.mxu0 0
    %852 = vmatprep.subr.bf16.mxu0 0
    %853 = vmatpush1.bf16.msra.mxu0 0
    %854 = vmatprep.subr.bf16.mxu0 0
    %855 = vmatpush1.bf16.msra.mxu0 0
    %856 = vmatprep.subr.bf16.mxu0 0
    %857 = vmatpush1.bf16.msra.mxu0 0
    %858 = vmatprep.mubr.bf16.mxu0 0
    %859 = vmatmul.mubr.bf16.gmra.mrb[0].mxu0 %v755
    %v860 = vpop.f32.mrb[0].mxu0
    %v861 = vadd.f32 %v777, %v860
    %v862 = vpop.f32.mrb[0].mxu0
    %v863 = vpop.f32.mrb[0].mxu0
    %v864 = vadd.f32 %v777, %v863
    %v865 = vpop.f32.mrb[0].mxu0
    %866 = vdwg.mxu0
    %v867 = vld [vmem:[%s3] sm:$0xff]
    %v868 = vld [vmem:[%s3 + $0x8] sm:$0xff]
    %v869 = vld [vmem:[%s3 + $0x10] sm:$0xff]
    %v870 = vld [vmem:[%s3 + $0x18] sm:$0xff]
    %v871 = vld [vmem:[%s3 + $0x20] sm:$0xff]
    %v872 = vld [vmem:[%s3 + $0x28] sm:$0xff]
    %v873 = vld [vmem:[%s3 + $0x30] sm:$0xff]
    %v874 = vld [vmem:[%s3 + $0x38] sm:$0xff]
    %v875 = vld [vmem:[%s3 + $0x40] sm:$0xff]
    %v876 = vld [vmem:[%s3 + $0x48] sm:$0xff]
    %v877 = vld [vmem:[%s3 + $0x50] sm:$0xff]
    %v878 = vld [vmem:[%s3 + $0x58] sm:$0xff]
    %v879 = vld [vmem:[%s3 + $0x60] sm:$0xff]
    %v880 = vld [vmem:[%s3 + $0x68] sm:$0xff]
    %v881 = vld [vmem:[%s3 + $0x70] sm:$0xff]
    %v882 = vld [vmem:[%s3 + $0x78] sm:$0xff]
    %v883 = vld [vmem:[%s3 + $0x80] sm:$0xff]
    %v884 = vld [vmem:[%s3 + $0x88] sm:$0xff]
    %v885 = vld [vmem:[%s3 + $0x90] sm:$0xff]
    %v886 = vld [vmem:[%s3 + $0x98] sm:$0xff]
    %v887 = vld [vmem:[%s3 + $0xa0] sm:$0xff]
    %v888 = vld [vmem:[%s3 + $0xa8] sm:$0xff]
    %v889 = vld [vmem:[%s3 + $0xb0] sm:$0xff]
    %v890 = vld [vmem:[%s3 + $0xb8] sm:$0xff]
    %v891 = vld [vmem:[%s3 + $0xc0] sm:$0xff]
    %v892 = vld [vmem:[%s3 + $0xc8] sm:$0xff]
    %v893 = vld [vmem:[%s3 + $0xd0] sm:$0xff]
    %v894 = vld [vmem:[%s3 + $0xd8] sm:$0xff]
    %v895 = vld [vmem:[%s3 + $0xe0] sm:$0xff]
    %v896 = vld [vmem:[%s3 + $0xe8] sm:$0xff]
    %v897 = vld [vmem:[%s3 + $0xf0] sm:$0xff]
    %v898 = vld [vmem:[%s3 + $0xf8] sm:$0xff]
    %v899 = vld [vmem:[%s3 + $0x100] sm:$0x11]
    %v900 = vld [vmem:[%s3 + $0x108] sm:$0x11]
    %v901 = vld [vmem:[%s3 + $0x110] sm:$0x11]
    %v902 = vld [vmem:[%s3 + $0x118] sm:$0x11]
    %v903 = vunpack.c.l.bf16 %v899
    %v904 = vunpack.c.h.bf16 %v899
    %v905 = vunpack.c.l.bf16 %v900
    %v906 = vunpack.c.h.bf16 %v900
    %v907 = vunpack.c.l.bf16 %v901
    %v908 = vunpack.c.h.bf16 %v901
    %v909 = vunpack.c.l.bf16 %v902
    %v910 = vunpack.c.h.bf16 %v902
    %v911 = vpack.c.bf16 %v864, %v861
    %v912 = vlaneseq
    %v913 = vshrl.u32 %v912, 7
    %v914 = vsub.s32 0, %v913
    %v915 = vrot.slane %v903, %v914
    %v916 = vlaneseq
    %v917 = vshrl.u32 %v916, 7
    %v918 = vsub.s32 0, %v917
    %v919 = vrot.slane %v904, %v918
    %v920 = vlaneseq
    %v921 = vshrl.u32 %v920, 7
    %v922 = vsub.s32 0, %v921
    %v923 = vrot.slane %v905, %v922
    %v924 = vlaneseq
    %v925 = vshrl.u32 %v924, 7
    %v926 = vsub.s32 0, %v925
    %v927 = vrot.slane %v906, %v926
    %v928 = vlaneseq
    %v929 = vshrl.u32 %v928, 7
    %v930 = vsub.s32 0, %v929
    %v931 = vrot.slane %v907, %v930
    %v932 = vlaneseq
    %v933 = vshrl.u32 %v932, 7
    %v934 = vsub.s32 0, %v933
    %v935 = vrot.slane %v908, %v934
    %v936 = vlaneseq
    %v937 = vshrl.u32 %v936, 7
    %v938 = vsub.s32 0, %v937
    %v939 = vrot.slane %v909, %v938
    %v940 = vlaneseq
    %v941 = vshrl.u32 %v940, 7
    %v942 = vsub.s32 0, %v941
    %v943 = vrot.slane %v910, %v942
    %v976 = vunpack.c.l.b16 %v867
    %v977 = vunpack.c.h.b16 %v867
    %v978 = vunpack.c.l.b16 %v868
    %v979 = vunpack.c.h.b16 %v868
    %v980 = vunpack.c.l.b16 %v869
    %v981 = vunpack.c.h.b16 %v869
    %v982 = vunpack.c.l.b16 %v870
    %v983 = vunpack.c.h.b16 %v870
    %v984 = vunpack.c.l.b16 %v871
    %v985 = vunpack.c.h.b16 %v871
    %v986 = vunpack.c.l.b16 %v872
    %v987 = vunpack.c.h.b16 %v872
    %v988 = vunpack.c.l.b16 %v873
    %v989 = vunpack.c.h.b16 %v873
    %v990 = vunpack.c.l.b16 %v874
    %v991 = vunpack.c.h.b16 %v874
    %v992 = vunpack.c.l.b16 %v875
    %v993 = vunpack.c.h.b16 %v875
    %v994 = vunpack.c.l.b16 %v876
    %v995 = vunpack.c.h.b16 %v876
    %v996 = vunpack.c.l.b16 %v877
    %v997 = vunpack.c.h.b16 %v877
    %v998 = vunpack.c.l.b16 %v878
    %v999 = vunpack.c.h.b16 %v878
    %v1000 = vunpack.c.l.b16 %v879
    %v1001 = vunpack.c.h.b16 %v879
    %v1002 = vunpack.c.l.b16 %v880
    %v1003 = vunpack.c.h.b16 %v880
    %v1004 = vunpack.c.l.b16 %v881
    %v1005 = vunpack.c.h.b16 %v881
    %v1006 = vunpack.c.l.b16 %v882
    %v1007 = vunpack.c.h.b16 %v882
    %v1008 = vunpack.c.l.b16 %v883
    %v1009 = vunpack.c.h.b16 %v883
    %v1010 = vunpack.c.l.b16 %v884
    %v1011 = vunpack.c.h.b16 %v884
    %v1012 = vunpack.c.l.b16 %v885
    %v1013 = vunpack.c.h.b16 %v885
    %v1014 = vunpack.c.l.b16 %v886
    %v1015 = vunpack.c.h.b16 %v886
    %v1016 = vunpack.c.l.b16 %v887
    %v1017 = vunpack.c.h.b16 %v887
    %v1018 = vunpack.c.l.b16 %v888
    %v1019 = vunpack.c.h.b16 %v888
    %v1020 = vunpack.c.l.b16 %v889
    %v1021 = vunpack.c.h.b16 %v889
    %v1022 = vunpack.c.l.b16 %v890
    %v1023 = vunpack.c.h.b16 %v890
    %v1024 = vunpack.c.l.b16 %v891
    %v1025 = vunpack.c.h.b16 %v891
    %v1026 = vunpack.c.l.b16 %v892
    %v1027 = vunpack.c.h.b16 %v892
    %v1028 = vunpack.c.l.b16 %v893
    %v1029 = vunpack.c.h.b16 %v893
    %v1030 = vunpack.c.l.b16 %v894
    %v1031 = vunpack.c.h.b16 %v894
    %v1032 = vunpack.c.l.b16 %v895
    %v1033 = vunpack.c.h.b16 %v895
    %v1034 = vunpack.c.l.b16 %v896
    %v1035 = vunpack.c.h.b16 %v896
    %v1036 = vunpack.c.l.b16 %v897
    %v1037 = vunpack.c.h.b16 %v897
    %v1038 = vunpack.c.l.b16 %v898
    %v1039 = vunpack.c.h.b16 %v898
    %v1040 = vpack.c.b16 %v984, %v976
    %v1041 = vpack.c.b16 %v985, %v977
    %v1042 = vpack.c.b16 %v986, %v978
    %v1043 = vpack.c.b16 %v987, %v979
    %v1044 = vpack.c.b16 %v988, %v980
    %v1045 = vpack.c.b16 %v989, %v981
    %v1046 = vpack.c.b16 %v990, %v982
    %v1047 = vpack.c.b16 %v991, %v983
    %v1048 = vpack.c.b16 %v1000, %v992
    %v1049 = vpack.c.b16 %v1001, %v993
    %v1050 = vpack.c.b16 %v1002, %v994
    %v1051 = vpack.c.b16 %v1003, %v995
    %v1052 = vpack.c.b16 %v1004, %v996
    %v1053 = vpack.c.b16 %v1005, %v997
    %v1054 = vpack.c.b16 %v1006, %v998
    %v1055 = vpack.c.b16 %v1007, %v999
    %v1056 = vpack.c.b16 %v1016, %v1008
    %v1057 = vpack.c.b16 %v1017, %v1009
    %v1058 = vpack.c.b16 %v1018, %v1010
    %v1059 = vpack.c.b16 %v1019, %v1011
    %v1060 = vpack.c.b16 %v1020, %v1012
    %v1061 = vpack.c.b16 %v1021, %v1013
    %v1062 = vpack.c.b16 %v1022, %v1014
    %v1063 = vpack.c.b16 %v1023, %v1015
    %v1064 = vpack.c.b16 %v1032, %v1024
    %v1065 = vpack.c.b16 %v1033, %v1025
    %v1066 = vpack.c.b16 %v1034, %v1026
    %v1067 = vpack.c.b16 %v1035, %v1027
    %v1068 = vpack.c.b16 %v1036, %v1028
    %v1069 = vpack.c.b16 %v1037, %v1029
    %v1070 = vpack.c.b16 %v1038, %v1030
    %v1071 = vpack.c.b16 %v1039, %v1031
    %v1105 = vsel %vm133, %v911, 0
    %1107 = vmatprep.subr.bf16.mxu0 %v1041
    %1108 = vmatpush1.bf16.msra.mxu0 %v1040
    %1109 = vmatprep.subr.bf16.mxu0 %v1049
    %1110 = vmatpush1.bf16.msra.mxu0 %v1048
    %1111 = vmatprep.subr.bf16.mxu0 %v1057
    %1112 = vmatpush1.bf16.msra.mxu0 %v1056
    %1113 = vmatprep.subr.bf16.mxu0 %v1065
    %1114 = vmatpush1.bf16.msra.mxu0 %v1064
    %1115 = vmatprep.subr.bf16.mxu0 0
    %1116 = vmatpush1.bf16.msra.mxu0 0
    %1117 = vmatprep.subr.bf16.mxu0 0
    %1118 = vmatpush1.bf16.msra.mxu0 0
    %1119 = vmatprep.subr.bf16.mxu0 0
    %1120 = vmatpush1.bf16.msra.mxu0 0
    %1121 = vmatprep.subr.bf16.mxu0 0
    %1122 = vmatpush1.bf16.msra.mxu0 0
    %1123 = vmatprep.subr.bf16.mxu0 0
    %1124 = vmatpush1.bf16.msra.mxu0 0
    %1125 = vmatprep.subr.bf16.mxu0 0
    %1126 = vmatpush1.bf16.msra.mxu0 0
    %1127 = vmatprep.subr.bf16.mxu0 0
    %1128 = vmatpush1.bf16.msra.mxu0 0
    %1129 = vmatprep.subr.bf16.mxu0 0
    %1130 = vmatpush1.bf16.msra.mxu0 0
    %1131 = vmatprep.subr.bf16.mxu0 0
    %1132 = vmatpush1.bf16.msra.mxu0 0
    %1133 = vmatprep.subr.bf16.mxu0 0
    %1134 = vmatpush1.bf16.msra.mxu0 0
    %1135 = vmatprep.subr.bf16.mxu0 0
    %1136 = vmatpush1.bf16.msra.mxu0 0
    %1137 = vmatprep.subr.bf16.mxu0 0
    %1138 = vmatpush1.bf16.msra.mxu0 0
    %1139 = vmatprep.mubr.bf16.mxu0 0
    %1140 = vmatmul.mubr.bf16.gmra.mrb[0].mxu0 %v1105
    %v1141 = vpop.f32.mrb[0].mxu0
    %v1142 = vadd.f32 %v915, %v1141
    %v1143 = vpop.f32.mrb[0].mxu0
    %v1144 = vadd.f32 %v919, %v1143
    %v1145 = vpop.f32.mrb[0].mxu0
    %v1146 = vadd.f32 %v915, %v1145
    %v1147 = vpop.f32.mrb[0].mxu0
    %v1148 = vadd.f32 %v919, %v1147
    %1149 = vdwg.mxu0
    %1150 = vmatprep.subr.bf16.mxu0 %v1043
    %1151 = vmatpush1.bf16.msra.mxu0 %v1042
    %1152 = vmatprep.subr.bf16.mxu0 %v1051
    %1153 = vmatpush1.bf16.msra.mxu0 %v1050
    %1154 = vmatprep.subr.bf16.mxu0 %v1059
    %1155 = vmatpush1.bf16.msra.mxu0 %v1058
    %1156 = vmatprep.subr.bf16.mxu0 %v1067
    %1157 = vmatpush1.bf16.msra.mxu0 %v1066
    %1158 = vmatprep.subr.bf16.mxu0 0
    %1159 = vmatpush1.bf16.msra.mxu0 0
    %1160 = vmatprep.subr.bf16.mxu0 0
    %1161 = vmatpush1.bf16.msra.mxu0 0
    %1162 = vmatprep.subr.bf16.mxu0 0
    %1163 = vmatpush1.bf16.msra.mxu0 0
    %1164 = vmatprep.subr.bf16.mxu0 0
    %1165 = vmatpush1.bf16.msra.mxu0 0
    %1166 = vmatprep.subr.bf16.mxu0 0
    %1167 = vmatpush1.bf16.msra.mxu0 0
    %1168 = vmatprep.subr.bf16.mxu0 0
    %1169 = vmatpush1.bf16.msra.mxu0 0
    %1170 = vmatprep.subr.bf16.mxu0 0
    %1171 = vmatpush1.bf16.msra.mxu0 0
    %1172 = vmatprep.subr.bf16.mxu0 0
    %1173 = vmatpush1.bf16.msra.mxu0 0
    %1174 = vmatprep.subr.bf16.mxu0 0
    %1175 = vmatpush1.bf16.msra.mxu0 0
    %1176 = vmatprep.subr.bf16.mxu0 0
    %1177 = vmatpush1.bf16.msra.mxu0 0
    %1178 = vmatprep.subr.bf16.mxu0 0
    %1179 = vmatpush1.bf16.msra.mxu0 0
    %1180 = vmatprep.subr.bf16.mxu0 0
    %1181 = vmatpush1.bf16.msra.mxu0 0
    %1182 = vmatprep.mubr.bf16.mxu0 0
    %1183 = vmatmul.mubr.bf16.gmra.mrb[0].mxu0 %v1105
    %v1184 = vpop.f32.mrb[0].mxu0
    %v1185 = vadd.f32 %v923, %v1184
    %v1186 = vpop.f32.mrb[0].mxu0
    %v1187 = vadd.f32 %v927, %v1186
    %v1188 = vpop.f32.mrb[0].mxu0
    %v1189 = vadd.f32 %v923, %v1188
    %v1190 = vpop.f32.mrb[0].mxu0
    %v1191 = vadd.f32 %v927, %v1190
    %1192 = vdwg.mxu0
    %1193 = vmatprep.subr.bf16.mxu0 %v1045
    %1194 = vmatpush1.bf16.msra.mxu0 %v1044
    %1195 = vmatprep.subr.bf16.mxu0 %v1053
    %1196 = vmatpush1.bf16.msra.mxu0 %v1052
    %1197 = vmatprep.subr.bf16.mxu0 %v1061
    %1198 = vmatpush1.bf16.msra.mxu0 %v1060
    %1199 = vmatprep.subr.bf16.mxu0 %v1069
    %1200 = vmatpush1.bf16.msra.mxu0 %v1068
    %1201 = vmatprep.subr.bf16.mxu0 0
    %1202 = vmatpush1.bf16.msra.mxu0 0
    %1203 = vmatprep.subr.bf16.mxu0 0
    %1204 = vmatpush1.bf16.msra.mxu0 0
    %1205 = vmatprep.subr.bf16.mxu0 0
    %1206 = vmatpush1.bf16.msra.mxu0 0
    %1207 = vmatprep.subr.bf16.mxu0 0
    %1208 = vmatpush1.bf16.msra.mxu0 0
    %1209 = vmatprep.subr.bf16.mxu0 0
    %1210 = vmatpush1.bf16.msra.mxu0 0
    %1211 = vmatprep.subr.bf16.mxu0 0
    %1212 = vmatpush1.bf16.msra.mxu0 0
    %1213 = vmatprep.subr.bf16.mxu0 0
    %1214 = vmatpush1.bf16.msra.mxu0 0
    %1215 = vmatprep.subr.bf16.mxu0 0
    %1216 = vmatpush1.bf16.msra.mxu0 0
    %1217 = vmatprep.subr.bf16.mxu0 0
    %1218 = vmatpush1.bf16.msra.mxu0 0
    %1219 = vmatprep.subr.bf16.mxu0 0
    %1220 = vmatpush1.bf16.msra.mxu0 0
    %1221 = vmatprep.subr.bf16.mxu0 0
    %1222 = vmatpush1.bf16.msra.mxu0 0
    %1223 = vmatprep.subr.bf16.mxu0 0
    %1224 = vmatpush1.bf16.msra.mxu0 0
    %1225 = vmatprep.mubr.bf16.mxu0 0
    %1226 = vmatmul.mubr.bf16.gmra.mrb[0].mxu0 %v1105
    %v1227 = vpop.f32.mrb[0].mxu0
    %v1228 = vadd.f32 %v931, %v1227
    %v1229 = vpop.f32.mrb[0].mxu0
    %v1230 = vadd.f32 %v935, %v1229
    %v1231 = vpop.f32.mrb[0].mxu0
    %v1232 = vadd.f32 %v931, %v1231
    %v1233 = vpop.f32.mrb[0].mxu0
    %v1234 = vadd.f32 %v935, %v1233
    %1235 = vdwg.mxu0
    %1236 = vmatprep.subr.bf16.mxu0 %v1047
    %1237 = vmatpush1.bf16.msra.mxu0 %v1046
    %1238 = vmatprep.subr.bf16.mxu0 %v1055
    %1239 = vmatpush1.bf16.msra.mxu0 %v1054
    %1240 = vmatprep.subr.bf16.mxu0 %v1063
    %1241 = vmatpush1.bf16.msra.mxu0 %v1062
    %1242 = vmatprep.subr.bf16.mxu0 %v1071
    %1243 = vmatpush1.bf16.msra.mxu0 %v1070
    %1244 = vmatprep.subr.bf16.mxu0 0
    %1245 = vmatpush1.bf16.msra.mxu0 0
    %1246 = vmatprep.subr.bf16.mxu0 0
    %1247 = vmatpush1.bf16.msra.mxu0 0
    %1248 = vmatprep.subr.bf16.mxu0 0
    %1249 = vmatpush1.bf16.msra.mxu0 0
    %1250 = vmatprep.subr.bf16.mxu0 0
    %1251 = vmatpush1.bf16.msra.mxu0 0
    %1252 = vmatprep.subr.bf16.mxu0 0
    %1253 = vmatpush1.bf16.msra.mxu0 0
    %1254 = vmatprep.subr.bf16.mxu0 0
    %1255 = vmatpush1.bf16.msra.mxu0 0
    %1256 = vmatprep.subr.bf16.mxu0 0
    %1257 = vmatpush1.bf16.msra.mxu0 0
    %1258 = vmatprep.subr.bf16.mxu0 0
    %1259 = vmatpush1.bf16.msra.mxu0 0
    %1260 = vmatprep.subr.bf16.mxu0 0
    %1261 = vmatpush1.bf16.msra.mxu0 0
    %1262 = vmatprep.subr.bf16.mxu0 0
    %1263 = vmatpush1.bf16.msra.mxu0 0
    %1264 = vmatprep.subr.bf16.mxu0 0
    %1265 = vmatpush1.bf16.msra.mxu0 0
    %1266 = vmatprep.subr.bf16.mxu0 0
    %1267 = vmatpush1.bf16.msra.mxu0 0
    %1268 = vmatprep.mubr.bf16.mxu0 0
    %1269 = vmatmul.mubr.bf16.gmra.mrb[0].mxu0 %v1105
    %v1270 = vpop.f32.mrb[0].mxu0
    %v1271 = vadd.f32 %v939, %v1270
    %v1272 = vpop.f32.mrb[0].mxu0
    %v1273 = vadd.f32 %v943, %v1272
    %v1274 = vpop.f32.mrb[0].mxu0
    %v1275 = vadd.f32 %v939, %v1274
    %v1276 = vpop.f32.mrb[0].mxu0
    %v1277 = vadd.f32 %v943, %v1276
    %1278 = vdwg.mxu0
    %v1279 = vmax.f32 %v1142, 0.0
    %v1280 = vmax.f32 %v1144, 0.0
    %v1281 = vmax.f32 %v1185, 0.0
    %v1282 = vmax.f32 %v1187, 0.0
    %v1283 = vmax.f32 %v1228, 0.0
    %v1284 = vmax.f32 %v1230, 0.0
    %v1285 = vmax.f32 %v1271, 0.0
    %v1286 = vmax.f32 %v1273, 0.0
    %v1287 = vmax.f32 %v1146, 0.0
    %v1288 = vmax.f32 %v1148, 0.0
    %v1289 = vmax.f32 %v1189, 0.0
    %v1290 = vmax.f32 %v1191, 0.0
    %v1291 = vmax.f32 %v1232, 0.0
    %v1292 = vmax.f32 %v1234, 0.0
    %v1293 = vmax.f32 %v1275, 0.0
    %v1294 = vmax.f32 %v1277, 0.0
    %v1295 = vpack.c.bf16 %v1287, %v1279
    %v1296 = vpack.c.bf16 %v1288, %v1280
    %v1297 = vpack.c.bf16 %v1289, %v1281
    %v1298 = vpack.c.bf16 %v1290, %v1282
    %v1299 = vpack.c.bf16 %v1291, %v1283
    %v1300 = vpack.c.bf16 %v1292, %v1284
    %v1301 = vpack.c.bf16 %v1293, %v1285
    %v1302 = vpack.c.bf16 %v1294, %v1286
    %v1303 = vld [vmem:[%s2 + $0x120] sm:$0xf]
    %v1304 = vld [vmem:[%s2 + $0x124] sm:$0xf]
    %v1305 = vld [vmem:[%s2 + $0x128] sm:$0xf]
    %v1306 = vld [vmem:[%s2 + $0x12c] sm:$0xf]
    %v1307 = vld [vmem:[%s2 + $0x130] sm:$0xf]
    %v1308 = vld [vmem:[%s2 + $0x134] sm:$0xf]
    %v1309 = vld [vmem:[%s2 + $0x138] sm:$0xf]
    %v1310 = vld [vmem:[%s2 + $0x13c] sm:$0xf]
    %v1311 = vld [vmem:[%s2 + $0x140] sm:$0xf]
    %v1312 = vld [vmem:[%s2 + $0x144] sm:$0xf]
    %v1313 = vld [vmem:[%s2 + $0x148] sm:$0xf]
    %v1314 = vld [vmem:[%s2 + $0x14c] sm:$0xf]
    %v1315 = vld [vmem:[%s2 + $0x150] sm:$0xf]
    %v1316 = vld [vmem:[%s2 + $0x154] sm:$0xf]
    %v1317 = vld [vmem:[%s2 + $0x158] sm:$0xf]
    %v1318 = vld [vmem:[%s2 + $0x15c] sm:$0xf]
    %v1319 = vld [vmem:[%s2 + $0x160] sm:$0xf]
    %v1320 = vld [vmem:[%s2 + $0x164] sm:$0xf]
    %v1321 = vld [vmem:[%s2 + $0x168] sm:$0xf]
    %v1322 = vld [vmem:[%s2 + $0x16c] sm:$0xf]
    %v1323 = vld [vmem:[%s2 + $0x170] sm:$0xf]
    %v1324 = vld [vmem:[%s2 + $0x174] sm:$0xf]
    %v1325 = vld [vmem:[%s2 + $0x178] sm:$0xf]
    %v1326 = vld [vmem:[%s2 + $0x17c] sm:$0xf]
    %v1327 = vld [vmem:[%s2 + $0x180] sm:$0xf]
    %v1328 = vld [vmem:[%s2 + $0x184] sm:$0xf]
    %v1329 = vld [vmem:[%s2 + $0x188] sm:$0xf]
    %v1330 = vld [vmem:[%s2 + $0x18c] sm:$0xf]
    %v1331 = vld [vmem:[%s2 + $0x190] sm:$0xf]
    %v1332 = vld [vmem:[%s2 + $0x194] sm:$0xf]
    %v1333 = vld [vmem:[%s2 + $0x198] sm:$0xf]
    %v1334 = vld [vmem:[%s2 + $0x19c] sm:$0xf]
    %v1335 = vld [vmem:[%s2 + $0x1a0] sm:$0xf]
    %v1336 = vld [vmem:[%s2 + $0x1a4] sm:$0xf]
    %v1337 = vld [vmem:[%s2 + $0x1a8] sm:$0xf]
    %v1338 = vld [vmem:[%s2 + $0x1ac] sm:$0xf]
    %v1339 = vld [vmem:[%s2 + $0x1b0] sm:$0xf]
    %v1340 = vld [vmem:[%s2 + $0x1b4] sm:$0xf]
    %v1341 = vld [vmem:[%s2 + $0x1b8] sm:$0xf]
    %v1342 = vld [vmem:[%s2 + $0x1bc] sm:$0xf]
    %v1343 = vld [vmem:[%s2 + $0x1c0] sm:$0xf]
    %v1344 = vld [vmem:[%s2 + $0x1c4] sm:$0xf]
    %v1345 = vld [vmem:[%s2 + $0x1c8] sm:$0xf]
    %v1346 = vld [vmem:[%s2 + $0x1cc] sm:$0xf]
    %v1347 = vld [vmem:[%s2 + $0x1d0] sm:$0xf]
    %v1348 = vld [vmem:[%s2 + $0x1d4] sm:$0xf]
    %v1349 = vld [vmem:[%s2 + $0x1d8] sm:$0xf]
    %v1350 = vld [vmem:[%s2 + $0x1dc] sm:$0xf]
    %v1351 = vld [vmem:[%s2 + $0x1e0] sm:$0xf]
    %v1352 = vld [vmem:[%s2 + $0x1e4] sm:$0xf]
    %v1353 = vld [vmem:[%s2 + $0x1e8] sm:$0xf]
    %v1354 = vld [vmem:[%s2 + $0x1ec] sm:$0xf]
    %v1355 = vld [vmem:[%s2 + $0x1f0] sm:$0xf]
    %v1356 = vld [vmem:[%s2 + $0x1f4] sm:$0xf]
    %v1357 = vld [vmem:[%s2 + $0x1f8] sm:$0xf]
    %v1358 = vld [vmem:[%s2 + $0x1fc] sm:$0xf]
    %v1359 = vld [vmem:[%s2 + $0x200] sm:$0xf]
    %v1360 = vld [vmem:[%s2 + $0x204] sm:$0xf]
    %v1361 = vld [vmem:[%s2 + $0x208] sm:$0xf]
    %v1362 = vld [vmem:[%s2 + $0x20c] sm:$0xf]
    %v1363 = vld [vmem:[%s2 + $0x210] sm:$0xf]
    %v1364 = vld [vmem:[%s2 + $0x214] sm:$0xf]
    %v1365 = vld [vmem:[%s2 + $0x218] sm:$0xf]
    %v1366 = vld [vmem:[%s2 + $0x21c] sm:$0xf]
    %v1367 = vld [vmem:[%s2 + $0x220] sm:$0xf]
    %v1368 = vld [vmem:[%s2 + $0x224] sm:$0xf]
    %v1369 = vld [vmem:[%s2 + $0x228] sm:$0xf]
    %v1370 = vld [vmem:[%s2 + $0x22c] sm:$0xf]
    %v1371 = vld [vmem:[%s2 + $0x230] sm:$0xf]
    %v1372 = vld [vmem:[%s2 + $0x234] sm:$0xf]
    %v1373 = vld [vmem:[%s2 + $0x238] sm:$0xf]
    %v1374 = vld [vmem:[%s2 + $0x23c] sm:$0xf]
    %v1375 = vld [vmem:[%s2 + $0x240] sm:$0xf]
    %v1376 = vld [vmem:[%s2 + $0x244] sm:$0xf]
    %v1377 = vld [vmem:[%s2 + $0x248] sm:$0xf]
    %v1378 = vld [vmem:[%s2 + $0x24c] sm:$0xf]
    %v1379 = vld [vmem:[%s2 + $0x250] sm:$0xf]
    %v1380 = vld [vmem:[%s2 + $0x254] sm:$0xf]
    %v1381 = vld [vmem:[%s2 + $0x258] sm:$0xf]
    %v1382 = vld [vmem:[%s2 + $0x25c] sm:$0xf]
    %v1383 = vld [vmem:[%s2 + $0x260] sm:$0xf]
    %v1384 = vld [vmem:[%s2 + $0x264] sm:$0xf]
    %v1385 = vld [vmem:[%s2 + $0x268] sm:$0xf]
    %v1386 = vld [vmem:[%s2 + $0x26c] sm:$0xf]
    %v1387 = vld [vmem:[%s2 + $0x270] sm:$0xf]
    %v1388 = vld [vmem:[%s2 + $0x274] sm:$0xf]
    %v1389 = vld [vmem:[%s2 + $0x278] sm:$0xf]
    %v1390 = vld [vmem:[%s2 + $0x27c] sm:$0xf]
    %v1391 = vld [vmem:[%s2 + $0x280] sm:$0xf]
    %v1392 = vld [vmem:[%s2 + $0x284] sm:$0xf]
    %v1393 = vld [vmem:[%s2 + $0x288] sm:$0xf]
    %v1394 = vld [vmem:[%s2 + $0x28c] sm:$0xf]
    %v1395 = vld [vmem:[%s2 + $0x290] sm:$0xf]
    %v1396 = vld [vmem:[%s2 + $0x294] sm:$0xf]
    %v1397 = vld [vmem:[%s2 + $0x298] sm:$0xf]
    %v1398 = vld [vmem:[%s2 + $0x29c] sm:$0xf]
    %v1399 = vld [vmem:[%s2 + $0x2a0] sm:$0xf]
    %v1400 = vld [vmem:[%s2 + $0x2a4] sm:$0xf]
    %v1401 = vld [vmem:[%s2 + $0x2a8] sm:$0xf]
    %v1402 = vld [vmem:[%s2 + $0x2ac] sm:$0xf]
    %v1403 = vld [vmem:[%s2 + $0x2b0] sm:$0xf]
    %v1404 = vld [vmem:[%s2 + $0x2b4] sm:$0xf]
    %v1405 = vld [vmem:[%s2 + $0x2b8] sm:$0xf]
    %v1406 = vld [vmem:[%s2 + $0x2bc] sm:$0xf]
    %v1407 = vld [vmem:[%s2 + $0x2c0] sm:$0xf]
    %v1408 = vld [vmem:[%s2 + $0x2c4] sm:$0xf]
    %v1409 = vld [vmem:[%s2 + $0x2c8] sm:$0xf]
    %v1410 = vld [vmem:[%s2 + $0x2cc] sm:$0xf]
    %v1411 = vld [vmem:[%s2 + $0x2d0] sm:$0xf]
    %v1412 = vld [vmem:[%s2 + $0x2d4] sm:$0xf]
    %v1413 = vld [vmem:[%s2 + $0x2d8] sm:$0xf]
    %v1414 = vld [vmem:[%s2 + $0x2dc] sm:$0xf]
    %v1415 = vld [vmem:[%s2 + $0x2e0] sm:$0xf]
    %v1416 = vld [vmem:[%s2 + $0x2e4] sm:$0xf]
    %v1417 = vld [vmem:[%s2 + $0x2e8] sm:$0xf]
    %v1418 = vld [vmem:[%s2 + $0x2ec] sm:$0xf]
    %v1419 = vld [vmem:[%s2 + $0x2f0] sm:$0xf]
    %v1420 = vld [vmem:[%s2 + $0x2f4] sm:$0xf]
    %v1421 = vld [vmem:[%s2 + $0x2f8] sm:$0xf]
    %v1422 = vld [vmem:[%s2 + $0x2fc] sm:$0xf]
    %v1423 = vld [vmem:[%s2 + $0x300] sm:$0xf]
    %v1424 = vld [vmem:[%s2 + $0x304] sm:$0xf]
    %v1425 = vld [vmem:[%s2 + $0x308] sm:$0xf]
    %v1426 = vld [vmem:[%s2 + $0x30c] sm:$0xf]
    %v1427 = vld [vmem:[%s2 + $0x310] sm:$0xf]
    %v1428 = vld [vmem:[%s2 + $0x314] sm:$0xf]
    %v1429 = vld [vmem:[%s2 + $0x318] sm:$0xf]
    %v1430 = vld [vmem:[%s2 + $0x31c] sm:$0xf]
    %v1559 = vunpack.c.l.b16 %v1303
    %v1560 = vunpack.c.l.b16 %v1304
    %v1561 = vunpack.c.l.b16 %v1305
    %v1562 = vunpack.c.l.b16 %v1306
    %v1563 = vunpack.c.l.b16 %v1307
    %v1564 = vunpack.c.l.b16 %v1308
    %v1565 = vunpack.c.l.b16 %v1309
    %v1566 = vunpack.c.l.b16 %v1310
    %v1567 = vunpack.c.l.b16 %v1311
    %v1568 = vunpack.c.l.b16 %v1312
    %v1569 = vunpack.c.l.b16 %v1313
    %v1570 = vunpack.c.l.b16 %v1314
    %v1571 = vunpack.c.l.b16 %v1315
    %v1572 = vunpack.c.l.b16 %v1316
    %v1573 = vunpack.c.l.b16 %v1317
    %v1574 = vunpack.c.l.b16 %v1318
    %v1575 = vunpack.c.l.b16 %v1319
    %v1576 = vunpack.c.l.b16 %v1320
    %v1577 = vunpack.c.l.b16 %v1321
    %v1578 = vunpack.c.l.b16 %v1322
    %v1579 = vunpack.c.l.b16 %v1323
    %v1580 = vunpack.c.l.b16 %v1324
    %v1581 = vunpack.c.l.b16 %v1325
    %v1582 = vunpack.c.l.b16 %v1326
    %v1583 = vunpack.c.l.b16 %v1327
    %v1584 = vunpack.c.l.b16 %v1328
    %v1585 = vunpack.c.l.b16 %v1329
    %v1586 = vunpack.c.l.b16 %v1330
    %v1587 = vunpack.c.l.b16 %v1331
    %v1588 = vunpack.c.l.b16 %v1332
    %v1589 = vunpack.c.l.b16 %v1333
    %v1590 = vunpack.c.l.b16 %v1334
    %v1591 = vunpack.c.l.b16 %v1335
    %v1592 = vunpack.c.l.b16 %v1336
    %v1593 = vunpack.c.l.b16 %v1337
    %v1594 = vunpack.c.l.b16 %v1338
    %v1595 = vunpack.c.l.b16 %v1339
    %v1596 = vunpack.c.l.b16 %v1340
    %v1597 = vunpack.c.l.b16 %v1341
    %v1598 = vunpack.c.l.b16 %v1342
    %v1599 = vunpack.c.l.b16 %v1343
    %v1600 = vunpack.c.l.b16 %v1344
    %v1601 = vunpack.c.l.b16 %v1345
    %v1602 = vunpack.c.l.b16 %v1346
    %v1603 = vunpack.c.l.b16 %v1347
    %v1604 = vunpack.c.l.b16 %v1348
    %v1605 = vunpack.c.l.b16 %v1349
    %v1606 = vunpack.c.l.b16 %v1350
    %v1607 = vunpack.c.l.b16 %v1351
    %v1608 = vunpack.c.l.b16 %v1352
    %v1609 = vunpack.c.l.b16 %v1353
    %v1610 = vunpack.c.l.b16 %v1354
    %v1611 = vunpack.c.l.b16 %v1355
    %v1612 = vunpack.c.l.b16 %v1356
    %v1613 = vunpack.c.l.b16 %v1357
    %v1614 = vunpack.c.l.b16 %v1358
    %v1615 = vunpack.c.l.b16 %v1359
    %v1616 = vunpack.c.l.b16 %v1360
    %v1617 = vunpack.c.l.b16 %v1361
    %v1618 = vunpack.c.l.b16 %v1362
    %v1619 = vunpack.c.l.b16 %v1363
    %v1620 = vunpack.c.l.b16 %v1364
    %v1621 = vunpack.c.l.b16 %v1365
    %v1622 = vunpack.c.l.b16 %v1366
    %v1623 = vunpack.c.l.b16 %v1367
    %v1624 = vunpack.c.l.b16 %v1368
    %v1625 = vunpack.c.l.b16 %v1369
    %v1626 = vunpack.c.l.b16 %v1370
    %v1627 = vunpack.c.l.b16 %v1371
    %v1628 = vunpack.c.l.b16 %v1372
    %v1629 = vunpack.c.l.b16 %v1373
    %v1630 = vunpack.c.l.b16 %v1374
    %v1631 = vunpack.c.l.b16 %v1375
    %v1632 = vunpack.c.l.b16 %v1376
    %v1633 = vunpack.c.l.b16 %v1377
    %v1634 = vunpack.c.l.b16 %v1378
    %v1635 = vunpack.c.l.b16 %v1379
    %v1636 = vunpack.c.l.b16 %v1380
    %v1637 = vunpack.c.l.b16 %v1381
    %v1638 = vunpack.c.l.b16 %v1382
    %v1639 = vunpack.c.l.b16 %v1383
    %v1640 = vunpack.c.l.b16 %v1384
    %v1641 = vunpack.c.l.b16 %v1385
    %v1642 = vunpack.c.l.b16 %v1386
    %v1643 = vunpack.c.l.b16 %v1387
    %v1644 = vunpack.c.l.b16 %v1388
    %v1645 = vunpack.c.l.b16 %v1389
    %v1646 = vunpack.c.l.b16 %v1390
    %v1647 = vunpack.c.l.b16 %v1391
    %v1648 = vunpack.c.l.b16 %v1392
    %v1649 = vunpack.c.l.b16 %v1393
    %v1650 = vunpack.c.l.b16 %v1394
    %v1651 = vunpack.c.l.b16 %v1395
    %v1652 = vunpack.c.l.b16 %v1396
    %v1653 = vunpack.c.l.b16 %v1397
    %v1654 = vunpack.c.l.b16 %v1398
    %v1655 = vunpack.c.l.b16 %v1399
    %v1656 = vunpack.c.l.b16 %v1400
    %v1657 = vunpack.c.l.b16 %v1401
    %v1658 = vunpack.c.l.b16 %v1402
    %v1659 = vunpack.c.l.b16 %v1403
    %v1660 = vunpack.c.l.b16 %v1404
    %v1661 = vunpack.c.l.b16 %v1405
    %v1662 = vunpack.c.l.b16 %v1406
    %v1663 = vunpack.c.l.b16 %v1407
    %v1664 = vunpack.c.l.b16 %v1408
    %v1665 = vunpack.c.l.b16 %v1409
    %v1666 = vunpack.c.l.b16 %v1410
    %v1667 = vunpack.c.l.b16 %v1411
    %v1668 = vunpack.c.l.b16 %v1412
    %v1669 = vunpack.c.l.b16 %v1413
    %v1670 = vunpack.c.l.b16 %v1414
    %v1671 = vunpack.c.l.b16 %v1415
    %v1672 = vunpack.c.l.b16 %v1416
    %v1673 = vunpack.c.l.b16 %v1417
    %v1674 = vunpack.c.l.b16 %v1418
    %v1675 = vunpack.c.l.b16 %v1419
    %v1676 = vunpack.c.l.b16 %v1420
    %v1677 = vunpack.c.l.b16 %v1421
    %v1678 = vunpack.c.l.b16 %v1422
    %v1679 = vunpack.c.l.b16 %v1423
    %v1680 = vunpack.c.l.b16 %v1424
    %v1681 = vunpack.c.l.b16 %v1425
    %v1682 = vunpack.c.l.b16 %v1426
    %v1683 = vunpack.c.l.b16 %v1427
    %v1684 = vunpack.c.l.b16 %v1428
    %v1685 = vunpack.c.l.b16 %v1429
    %v1686 = vunpack.c.l.b16 %v1430
    %v1687 = vpack.c.b16 %v1560, %v1559
    %v1688 = vpack.c.b16 %v1562, %v1561
    %v1689 = vpack.c.b16 %v1564, %v1563
    %v1690 = vpack.c.b16 %v1566, %v1565
    %v1691 = vpack.c.b16 %v1568, %v1567
    %v1692 = vpack.c.b16 %v1570, %v1569
    %v1693 = vpack.c.b16 %v1572, %v1571
    %v1694 = vpack.c.b16 %v1574, %v1573
    %v1695 = vpack.c.b16 %v1576, %v1575
    %v1696 = vpack.c.b16 %v1578, %v1577
    %v1697 = vpack.c.b16 %v1580, %v1579
    %v1698 = vpack.c.b16 %v1582, %v1581
    %v1699 = vpack.c.b16 %v1584, %v1583
    %v1700 = vpack.c.b16 %v1586, %v1585
    %v1701 = vpack.c.b16 %v1588, %v1587
    %v1702 = vpack.c.b16 %v1590, %v1589
    %v1703 = vpack.c.b16 %v1592, %v1591
    %v1704 = vpack.c.b16 %v1594, %v1593
    %v1705 = vpack.c.b16 %v1596, %v1595
    %v1706 = vpack.c.b16 %v1598, %v1597
    %v1707 = vpack.c.b16 %v1600, %v1599
    %v1708 = vpack.c.b16 %v1602, %v1601
    %v1709 = vpack.c.b16 %v1604, %v1603
    %v1710 = vpack.c.b16 %v1606, %v1605
    %v1711 = vpack.c.b16 %v1608, %v1607
    %v1712 = vpack.c.b16 %v1610, %v1609
    %v1713 = vpack.c.b16 %v1612, %v1611
    %v1714 = vpack.c.b16 %v1614, %v1613
    %v1715 = vpack.c.b16 %v1616, %v1615
    %v1716 = vpack.c.b16 %v1618, %v1617
    %v1717 = vpack.c.b16 %v1620, %v1619
    %v1718 = vpack.c.b16 %v1622, %v1621
    %v1719 = vpack.c.b16 %v1624, %v1623
    %v1720 = vpack.c.b16 %v1626, %v1625
    %v1721 = vpack.c.b16 %v1628, %v1627
    %v1722 = vpack.c.b16 %v1630, %v1629
    %v1723 = vpack.c.b16 %v1632, %v1631
    %v1724 = vpack.c.b16 %v1634, %v1633
    %v1725 = vpack.c.b16 %v1636, %v1635
    %v1726 = vpack.c.b16 %v1638, %v1637
    %v1727 = vpack.c.b16 %v1640, %v1639
    %v1728 = vpack.c.b16 %v1642, %v1641
    %v1729 = vpack.c.b16 %v1644, %v1643
    %v1730 = vpack.c.b16 %v1646, %v1645
    %v1731 = vpack.c.b16 %v1648, %v1647
    %v1732 = vpack.c.b16 %v1650, %v1649
    %v1733 = vpack.c.b16 %v1652, %v1651
    %v1734 = vpack.c.b16 %v1654, %v1653
    %v1735 = vpack.c.b16 %v1656, %v1655
    %v1736 = vpack.c.b16 %v1658, %v1657
    %v1737 = vpack.c.b16 %v1660, %v1659
    %v1738 = vpack.c.b16 %v1662, %v1661
    %v1739 = vpack.c.b16 %v1664, %v1663
    %v1740 = vpack.c.b16 %v1666, %v1665
    %v1741 = vpack.c.b16 %v1668, %v1667
    %v1742 = vpack.c.b16 %v1670, %v1669
    %v1743 = vpack.c.b16 %v1672, %v1671
    %v1744 = vpack.c.b16 %v1674, %v1673
    %v1745 = vpack.c.b16 %v1676, %v1675
    %v1746 = vpack.c.b16 %v1678, %v1677
    %v1747 = vpack.c.b16 %v1680, %v1679
    %v1748 = vpack.c.b16 %v1682, %v1681
    %v1749 = vpack.c.b16 %v1684, %v1683
    %v1750 = vpack.c.b16 %v1686, %v1685
    %1815 = vmatprep.subr.bf16.mxu0 0
    %1816 = vmatpush1.bf16.msra.mxu0 %v1687
    %1817 = vmatprep.subr.bf16.mxu0 0
    %1818 = vmatpush1.bf16.msra.mxu0 %v1688
    %1819 = vmatprep.subr.bf16.mxu0 0
    %1820 = vmatpush1.bf16.msra.mxu0 %v1689
    %1821 = vmatprep.subr.bf16.mxu0 0
    %1822 = vmatpush1.bf16.msra.mxu0 %v1690
    %1823 = vmatprep.subr.bf16.mxu0 0
    %1824 = vmatpush1.bf16.msra.mxu0 %v1691
    %1825 = vmatprep.subr.bf16.mxu0 0
    %1826 = vmatpush1.bf16.msra.mxu0 %v1692
    %1827 = vmatprep.subr.bf16.mxu0 0
    %1828 = vmatpush1.bf16.msra.mxu0 %v1693
    %1829 = vmatprep.subr.bf16.mxu0 0
    %1830 = vmatpush1.bf16.msra.mxu0 %v1694
    %1831 = vmatprep.subr.bf16.mxu0 0
    %1832 = vmatpush1.bf16.msra.mxu0 %v1695
    %1833 = vmatprep.subr.bf16.mxu0 0
    %1834 = vmatpush1.bf16.msra.mxu0 %v1696
    %1835 = vmatprep.subr.bf16.mxu0 0
    %1836 = vmatpush1.bf16.msra.mxu0 %v1697
    %1837 = vmatprep.subr.bf16.mxu0 0
    %1838 = vmatpush1.bf16.msra.mxu0 %v1698
    %1839 = vmatprep.subr.bf16.mxu0 0
    %1840 = vmatpush1.bf16.msra.mxu0 %v1699
    %1841 = vmatprep.subr.bf16.mxu0 0
    %1842 = vmatpush1.bf16.msra.mxu0 %v1700
    %1843 = vmatprep.subr.bf16.mxu0 0
    %1844 = vmatpush1.bf16.msra.mxu0 %v1701
    %1845 = vmatprep.subr.bf16.mxu0 0
    %1846 = vmatpush1.bf16.msra.mxu0 %v1702
    %1847 = vmatprep.mubr.bf16.mxu0 %v1296
    %1848 = vmatmul.mubr.bf16.gmra.mrb[0].mxu0 %v1295
    %v1849 = vpop.f32.mrb[0].mxu0
    %v1850 = vadd.f32 0.0, %v1849
    %v1851 = vpop.f32.mrb[0].mxu0
    %v1852 = vpop.f32.mrb[0].mxu0
    %v1853 = vadd.f32 0.0, %v1852
    %v1854 = vpop.f32.mrb[0].mxu0
    %1855 = vdwg.mxu0
    %1856 = vmatprep.subr.bf16.mxu0 0
    %1857 = vmatpush1.bf16.msra.mxu0 %v1703
    %1858 = vmatprep.subr.bf16.mxu0 0
    %1859 = vmatpush1.bf16.msra.mxu0 %v1704
    %1860 = vmatprep.subr.bf16.mxu0 0
    %1861 = vmatpush1.bf16.msra.mxu0 %v1705
    %1862 = vmatprep.subr.bf16.mxu0 0
    %1863 = vmatpush1.bf16.msra.mxu0 %v1706
    %1864 = vmatprep.subr.bf16.mxu0 0
    %1865 = vmatpush1.bf16.msra.mxu0 %v1707
    %1866 = vmatprep.subr.bf16.mxu0 0
    %1867 = vmatpush1.bf16.msra.mxu0 %v1708
    %1868 = vmatprep.subr.bf16.mxu0 0
    %1869 = vmatpush1.bf16.msra.mxu0 %v1709
    %1870 = vmatprep.subr.bf16.mxu0 0
    %1871 = vmatpush1.bf16.msra.mxu0 %v1710
    %1872 = vmatprep.subr.bf16.mxu0 0
    %1873 = vmatpush1.bf16.msra.mxu0 %v1711
    %1874 = vmatprep.subr.bf16.mxu0 0
    %1875 = vmatpush1.bf16.msra.mxu0 %v1712
    %1876 = vmatprep.subr.bf16.mxu0 0
    %1877 = vmatpush1.bf16.msra.mxu0 %v1713
    %1878 = vmatprep.subr.bf16.mxu0 0
    %1879 = vmatpush1.bf16.msra.mxu0 %v1714
    %1880 = vmatprep.subr.bf16.mxu0 0
    %1881 = vmatpush1.bf16.msra.mxu0 %v1715
    %1882 = vmatprep.subr.bf16.mxu0 0
    %1883 = vmatpush1.bf16.msra.mxu0 %v1716
    %1884 = vmatprep.subr.bf16.mxu0 0
    %1885 = vmatpush1.bf16.msra.mxu0 %v1717
    %1886 = vmatprep.subr.bf16.mxu0 0
    %1887 = vmatpush1.bf16.msra.mxu0 %v1718
    %1888 = vmatprep.mubr.bf16.mxu0 %v1298
    %1889 = vmatmul.mubr.bf16.gmra.mrb[0].mxu0 %v1297
    %v1890 = vpop.f32.mrb[0].mxu0
    %v1891 = vadd.f32 %v1850, %v1890
    %v1892 = vpop.f32.mrb[0].mxu0
    %v1893 = vpop.f32.mrb[0].mxu0
    %v1894 = vadd.f32 %v1853, %v1893
    %v1895 = vpop.f32.mrb[0].mxu0
    %1896 = vdwg.mxu0
    %1897 = vmatprep.subr.bf16.mxu0 0
    %1898 = vmatpush1.bf16.msra.mxu0 %v1719
    %1899 = vmatprep.subr.bf16.mxu0 0
    %1900 = vmatpush1.bf16.msra.mxu0 %v1720
    %1901 = vmatprep.subr.bf16.mxu0 0
    %1902 = vmatpush1.bf16.msra.mxu0 %v1721
    %1903 = vmatprep.subr.bf16.mxu0 0
    %1904 = vmatpush1.bf16.msra.mxu0 %v1722
    %1905 = vmatprep.subr.bf16.mxu0 0
    %1906 = vmatpush1.bf16.msra.mxu0 %v1723
    %1907 = vmatprep.subr.bf16.mxu0 0
    %1908 = vmatpush1.bf16.msra.mxu0 %v1724
    %1909 = vmatprep.subr.bf16.mxu0 0
    %1910 = vmatpush1.bf16.msra.mxu0 %v1725
    %1911 = vmatprep.subr.bf16.mxu0 0
    %1912 = vmatpush1.bf16.msra.mxu0 %v1726
    %1913 = vmatprep.subr.bf16.mxu0 0
    %1914 = vmatpush1.bf16.msra.mxu0 %v1727
    %1915 = vmatprep.subr.bf16.mxu0 0
    %1916 = vmatpush1.bf16.msra.mxu0 %v1728
    %1917 = vmatprep.subr.bf16.mxu0 0
    %1918 = vmatpush1.bf16.msra.mxu0 %v1729
    %1919 = vmatprep.subr.bf16.mxu0 0
    %1920 = vmatpush1.bf16.msra.mxu0 %v1730
    %1921 = vmatprep.subr.bf16.mxu0 0
    %1922 = vmatpush1.bf16.msra.mxu0 %v1731
    %1923 = vmatprep.subr.bf16.mxu0 0
    %1924 = vmatpush1.bf16.msra.mxu0 %v1732
    %1925 = vmatprep.subr.bf16.mxu0 0
    %1926 = vmatpush1.bf16.msra.mxu0 %v1733
    %1927 = vmatprep.subr.bf16.mxu0 0
    %1928 = vmatpush1.bf16.msra.mxu0 %v1734
    %1929 = vmatprep.mubr.bf16.mxu0 %v1300
    %1930 = vmatmul.mubr.bf16.gmra.mrb[0].mxu0 %v1299
    %v1931 = vpop.f32.mrb[0].mxu0
    %v1932 = vadd.f32 %v1891, %v1931
    %v1933 = vpop.f32.mrb[0].mxu0
    %v1934 = vpop.f32.mrb[0].mxu0
    %v1935 = vadd.f32 %v1894, %v1934
    %v1936 = vpop.f32.mrb[0].mxu0
    %1937 = vdwg.mxu0
    %1938 = vmatprep.subr.bf16.mxu0 0
    %1939 = vmatpush1.bf16.msra.mxu0 %v1735
    %1940 = vmatprep.subr.bf16.mxu0 0
    %1941 = vmatpush1.bf16.msra.mxu0 %v1736
    %1942 = vmatprep.subr.bf16.mxu0 0
    %1943 = vmatpush1.bf16.msra.mxu0 %v1737
    %1944 = vmatprep.subr.bf16.mxu0 0
    %1945 = vmatpush1.bf16.msra.mxu0 %v1738
    %1946 = vmatprep.subr.bf16.mxu0 0
    %1947 = vmatpush1.bf16.msra.mxu0 %v1739
    %1948 = vmatprep.subr.bf16.mxu0 0
    %1949 = vmatpush1.bf16.msra.mxu0 %v1740
    %1950 = vmatprep.subr.bf16.mxu0 0
    %1951 = vmatpush1.bf16.msra.mxu0 %v1741
    %1952 = vmatprep.subr.bf16.mxu0 0
    %1953 = vmatpush1.bf16.msra.mxu0 %v1742
    %1954 = vmatprep.subr.bf16.mxu0 0
    %1955 = vmatpush1.bf16.msra.mxu0 %v1743
    %1956 = vmatprep.subr.bf16.mxu0 0
    %1957 = vmatpush1.bf16.msra.mxu0 %v1744
    %1958 = vmatprep.subr.bf16.mxu0 0
    %1959 = vmatpush1.bf16.msra.mxu0 %v1745
    %1960 = vmatprep.subr.bf16.mxu0 0
    %1961 = vmatpush1.bf16.msra.mxu0 %v1746
    %1962 = vmatprep.subr.bf16.mxu0 0
    %1963 = vmatpush1.bf16.msra.mxu0 %v1747
    %1964 = vmatprep.subr.bf16.mxu0 0
    %1965 = vmatpush1.bf16.msra.mxu0 %v1748
    %1966 = vmatprep.subr.bf16.mxu0 0
    %1967 = vmatpush1.bf16.msra.mxu0 %v1749
    %1968 = vmatprep.subr.bf16.mxu0 0
    %1969 = vmatpush1.bf16.msra.mxu0 %v1750
    %1970 = vmatprep.mubr.bf16.mxu0 %v1302
    %1971 = vmatmul.mubr.bf16.gmra.mrb[0].mxu0 %v1301
    %v1972 = vpop.f32.mrb[0].mxu0
    %v1973 = vadd.f32 %v1932, %v1972
    %v1974 = vpop.f32.mrb[0].mxu0
    %v1975 = vpop.f32.mrb[0].mxu0
    %v1976 = vadd.f32 %v1935, %v1975
    %v1977 = vpop.f32.mrb[0].mxu0
    %1978 = vdwg.mxu0
    %v1979 = vadd.f32 %v861, %v1973
    %v1980 = vadd.f32 %v864, %v1976
    %v1981 = vld [vmem:[%s4 + $0x3] sm:$0x1]
    %v1982 = vlaneseq
    %v1983 = vshrl.u32 %v1982, 7
    %v1984 = vsub.s32 0, %v1983
    %v1985 = vrot.slane %v1981, %v1984
    %v1986 = vadd.f32 %v1979, %v1985
    %v1987 = vadd.f32 %v1980, %v1985
    %v1988 = vsel %vm133, %v1986, 0.0
    %1989 = vadd.xlane.f32.xlu0 %v1988
    %v1990 = vpop.xlane.xlu0 %1989
    %v1991 = vsel %vm133, %v1987, 0.0
    %1992 = vadd.xlane.f32.xlu0 %v1991
    %v1993 = vpop.xlane.xlu0 %1992
    %v1994 = vrcp.pop 64.0
    %v1995 = vmul.f32 %v1990, %v1994
    %v1996 = vmul.f32 %v1993, %v1994
    %v1997 = vmul.f32 %v1986, %v1986
    %v1998 = vmul.f32 %v1987, %v1987
    %v1999 = vsel %vm133, %v1997, 0.0
    %2000 = vadd.xlane.f32.xlu0 %v1999
    %v2001 = vpop.xlane.xlu0 %2000
    %v2002 = vsel %vm133, %v1998, 0.0
    %2003 = vadd.xlane.f32.xlu0 %v2002
    %v2004 = vpop.xlane.xlu0 %2003
    %v2005 = vmul.f32 %v2001, %v1994
    %v2006 = vmul.f32 %v2004, %v1994
    %v2007 = vmul.f32 %v1995, %v1995
    %v2008 = vmul.f32 %v1996, %v1996
    %v2009 = vsub.f32 %v2005, %v2007
    %v2010 = vsub.f32 %v2006, %v2008
    %v2011 = vsub.f32 %v1986, %v1995
    %v2012 = vsub.f32 %v1987, %v1996
    %v2013 = vadd.f32 %v2009, 1e-05
    %v2014 = vadd.f32 %v2010, 1e-05
    %v2015 = vrsqrt.pop %v2013
    %v2016 = vrsqrt.pop %v2014
    %v2017 = vmul.f32 %v2011, %v2015
    %v2018 = vmul.f32 %v2012, %v2016
    %v2019 = vld [vmem:[%s4 + $0x4] sm:$0x1]
    %v2020 = vlaneseq
    %v2021 = vshrl.u32 %v2020, 7
    %v2022 = vsub.s32 0, %v2021
    %v2023 = vrot.slane %v2019, %v2022
    %v2024 = vmul.f32 %v2017, %v2023
    %v2025 = vmul.f32 %v2018, %v2023
    %v2026 = vld [vmem:[%s4 + $0x5] sm:$0x1]
    %v2027 = vlaneseq
    %v2028 = vshrl.u32 %v2027, 7
    %v2029 = vsub.s32 0, %v2028
    %v2030 = vrot.slane %v2026, %v2029
    %v2031 = vadd.f32 %v2024, %v2030
    %v2032 = vadd.f32 %v2025, %v2030
    %v2033 = vmax.f32 %v2031, 0.0
    %v2034 = vmax.f32 %v2032, 0.0
    %2037 = vrot.lane.b32.xlu0 %v2033, 64
    %v2038 = vpop.permute.xlu0 %2037
    %2039 = vrot.lane.b32.xlu0 %v2034, 64
    %v2040 = vpop.permute.xlu0 %2039
    %v2043 = vsel %vm133, %v114, %v2038
    %v2044 = vsel %vm133, %v119, %v2040
    %2045 = vst [vmem:[#allocation2] sm:$0xff] %v2043
    %2046 = vst [vmem:[#allocation2 + $0x8] sm:$0xff] %v2044
    // Predicated region
    $region22: #{tpu_custom_call.1} parent=1 // pred_check
      _
    $region23: #{tpu_custom_call.1} parent=1 // pred_check_branch
      %2048 = sbr.rel (0) target = $region25
    $region24: #{tpu_custom_call.1} parent=1 // pred_region
      %s2050 = ssub.s32 256, 256
      %2051 = vsyncadd [#allocation3], %s2050
      %s2052 = sshll.u32 [#allocation2], 4
      %s2053 = int_to_ptr.vmem [resolvable:$true] %s2052
      %2058 = dma.vmem_to_hbm [thread:$0]  %s2053, 256, %s5, [#allocation3], 128, 128, 8
    $region25: #{tpu_custom_call.1} parent=1 // pred_fallthru
      _
    // Predicated region
    $region26: #{tpu_custom_call.1} parent=1 // pred_check
      _
    $region27: #{tpu_custom_call.1} parent=1 // pred_check_branch
      %2060 = sbr.rel (0) target = $region29
    $region28: #{tpu_custom_call.1} parent=1 // pred_region
      %2061 = dma.done [#allocation3], 256
    $region29: #{tpu_custom_call.1} parent=1 // pred_fallthru
      _
    %2062 = vsyncpa [#allocation3], 1

</llo_original>
